<compile_context>
chip_gen: v7x
topology: tpu7x:2x2x1
jax: 0.10.0
libtpu: 0.0.40
codegen_flags: <defaults>
</compile_context>

<pallas_src>
import numpy as np

import jax
import jax.numpy as jnp
from jax.experimental import pallas as pl
from jax.experimental.pallas import tpu as pltpu


# ----------------------------------------------------------------------------
# Graph helpers (numpy, mirror the PyTorch reference exactly)
# ----------------------------------------------------------------------------
def k_adjacency(A, k, with_self=False, self_factor=1):
    I = np.eye(len(A), dtype=A.dtype)
    if k == 0:
        return I
    Ak = np.minimum(np.linalg.matrix_power(A + I, k), 1) - \
         np.minimum(np.linalg.matrix_power(A + I, k - 1), 1)
    if with_self:
        Ak += self_factor * I
    return Ak


def normalize_adjacency_matrix(A):
    node_degrees = A.sum(-1)
    degs_inv_sqrt = np.power(node_degrees, -0.5)
    norm_degs_matrix = np.eye(len(node_degrees)) * degs_inv_sqrt
    return (norm_degs_matrix @ A @ norm_degs_matrix).astype(np.float32)


def build_spatial_temporal_graph(A_binary, window_size):
    A_with_I = A_binary + np.eye(len(A_binary), dtype=A_binary.dtype)
    return np.tile(A_with_I, (window_size, window_size)).copy()


# ----------------------------------------------------------------------------
# UnfoldTemporalWindows (stride=1, dilation=1, odd window) -- plain JAX glue
# ----------------------------------------------------------------------------
def unfold_temporal(x, ws):
    # (N, C, T, V) -> (N, C, T, ws*V), zero padded like nn.Unfold
    pad = (ws - 1) // 2
    xp = jnp.pad(x, ((0, 0), (0, 0), (pad, pad), (0, 0)))
    N, C, T, V = x.shape
    wins = [xp[:, :, w:w + T, :] for w in range(ws)]
    xw = jnp.stack(wins, axis=3)                 # (N, C, T, ws, V)
    return xw.reshape(N, C, T, ws * V)


def build_xt(x, ws):
    """Transposed unfold for the kernel: XT[n, w*V+u, c*T+t] = x[n, c, t+w-pad, u]."""
    N, C, T, V = x.shape
    pad = (ws - 1) // 2
    xp = jnp.pad(x, ((0, 0), (0, 0), (pad, pad), (0, 0)))
    wins = [xp[:, :, w:w + T, :] for w in range(ws)]     # each (N, C, T, V)
    xw = jnp.stack(wins, axis=1)                         # (N, ws, C, T, V)
    xw = jnp.transpose(xw, (0, 1, 4, 2, 3))              # (N, ws, V, C, T)
    return xw.reshape(N, ws * V, C * T)


# ----------------------------------------------------------------------------
# Pallas kernel: both window branches + final sum, one batch element / grid step
# ----------------------------------------------------------------------------
def _mw_msg3d_kernel(xt5_ref, a3_ref, a5_ref, wmi3_ref, wmi5_ref, b1_ref,
                     w2i3_ref, w2i5_ref, b2_ref, o_ref, y3_ref, y5_ref):
    V, CoT = o_ref.shape                       # (16, C_out*T = 128) -- lane dense
    f32 = jnp.float32

    xt5 = xt5_ref[...]                         # (5V, C*T) bf16
    xt3 = xt5[V:4 * V, :]                      # ws=3 unfold == middle 3 windows

    out = jnp.zeros((V, CoT), f32)

    branches = ((0, xt3, a3_ref, wmi3_ref, w2i3_ref, y3_ref),
                (1, xt5, a5_ref, wmi5_ref, w2i5_ref, y5_ref))
    for br, xt, a_ref, wmi_ref, w2i_ref, y_ref in branches:
        Vl = xt.shape[0]                       # ws*V
        S = wmi_ref.shape[0]
        ws = w2i_ref.shape[0]

        # ---- stage A: 1x1 channel mix per scale (BN1 scale folded), K = C*T --
        for s in range(S):
            y_s = jnp.dot(xt, wmi_ref[s], preferred_element_type=f32)
            y_ref[s * Vl:(s + 1) * Vl, :] = y_s.astype(y_ref.dtype)

        # ---- stage B: graph aggregation fused over all scales ----------------
        # one big-K matmul: K = S*ws*V = 144 (ws=3) / 240 (ws=5)
        hT = jnp.dot(a_ref[...], y_ref[...], preferred_element_type=f32)
        hT = jnp.maximum(hT + b1_ref[br], 0.0)            # folded bias + ReLU
        hT = hT.astype(xt.dtype)                           # bf16 for the MXU

        # ---- stage D: Conv3d(1, ws, 1) window reduction (BN2 scale folded), --
        # ---- accumulated straight into the transposed lane-dense output ------
        for w in range(ws):
            out = out + jnp.dot(hT[w * V:(w + 1) * V, :], w2i_ref[w],
                                preferred_element_type=f32)

    # folded Conv3d biases + BN2 biases of both branches, added once
    o_ref[...] = out + b2_ref[...]                         # (V, C_out*T)


def multiwindow_ms_g3d(x, p3, p5):
    """MultiWindow_MS_G3D forward: x (N, C_in, T, V) -> (N, C_out, T, V)."""
    N, C, T, V = x.shape
    xt5 = build_xt(x, 5).astype(jnp.bfloat16)              # (N, 5V, C*T)
    Vl5, CT = xt5.shape[1], xt5.shape[2]
    Vl3 = 3 * V
    S, _, CeT = p3["wmiT_b"].shape
    CoT = p3["w2iT_b"].shape[2]
    Co = CoT // T

    b1 = jnp.stack([p3["bias1r"], p5["bias1r"]])           # (2, 1, Ce*T)  f32
    b2 = p3["bias2r"] + p5["bias2r"]                       # (1, C_out*T)  f32

    out_t = pl.pallas_call(
        _mw_msg3d_kernel,
        out_shape=jax.ShapeDtypeStruct((N, V, CoT), jnp.float32),
        grid=(N,),
        in_specs=[
            pl.BlockSpec((None, Vl5, CT), lambda n: (n, 0, 0)),       # xt5 (per n)
            pl.BlockSpec((Vl3, S * Vl3), lambda n: (0, 0)),           # A_cat ws=3
            pl.BlockSpec((Vl5, S * Vl5), lambda n: (0, 0)),           # A_cat ws=5
            pl.BlockSpec((S, CT, CeT), lambda n: (0, 0, 0)),          # wmiT ws=3
            pl.BlockSpec((S, CT, CeT), lambda n: (0, 0, 0)),          # wmiT ws=5
            pl.BlockSpec((2, 1, CeT), lambda n: (0, 0, 0)),           # bias1 (both)
            pl.BlockSpec((3, CeT, CoT), lambda n: (0, 0, 0)),         # w2iT ws=3
            pl.BlockSpec((5, CeT, CoT), lambda n: (0, 0, 0)),         # w2iT ws=5
            pl.BlockSpec((1, CoT), lambda n: (0, 0)),                 # bias2 (sum)
        ],
        out_specs=pl.BlockSpec((None, V, CoT), lambda n: (n, 0, 0)),
        scratch_shapes=[pltpu.VMEM((S * Vl3, CeT), jnp.bfloat16),     # Y (ws=3)
                        pltpu.VMEM((S * Vl5, CeT), jnp.bfloat16)],    # Y (ws=5)
        compiler_params=pltpu.CompilerParams(dimension_semantics=("parallel",)),
    )(xt5, p3["A_cat_b"], p5["A_cat_b"], p3["wmiT_b"], p5["wmiT_b"], b1,
      p3["w2iT_b"], p5["w2iT_b"], b2)

    # (N, V, C_out*T) -> (N, C_out, T, V)
    return out_t.reshape(N, V, Co, T).transpose(0, 2, 3, 1)


# ----------------------------------------------------------------------------
# Deterministic parameter construction + kernel-side folding for one branch
# ----------------------------------------------------------------------------
def make_branch_params(key, A_binary, num_scales, ws, C_in, C_out, T, eps=1e-5):
    V = A_binary.shape[0]
    S = num_scales
    Ce = C_in          # embed_factor=1 and in_channels != 3 -> embed == in_channels
    Vl = ws * V

    # fixed graph tensor A_scales (exactly as in the PyTorch module)
    A_large = build_spatial_temporal_graph(A_binary, ws)
    A_scales = np.concatenate([
        normalize_adjacency_matrix(k_adjacency(A_large, k, with_self=True))
        for k in range(S)
    ])                                                     # (S*Vl, Vl)

    keys = jax.random.split(key, 13)
    A_res = jax.random.uniform(keys[0], A_scales.shape, jnp.float32, -1e-6, 1e-6)
    A = jnp.asarray(A_scales, jnp.float32) + A_res         # (S*Vl, Vl)

    # MLP: Conv2d(S*C_in -> Ce, 1x1) + BN (linear activation)
    Wconv1 = jax.random.normal(keys[1], (Ce, S * C_in), jnp.float32) * 0.1
    bconv1 = jax.random.normal(keys[2], (Ce,), jnp.float32) * 0.1
    g1 = jax.random.uniform(keys[3], (Ce,), jnp.float32, 0.5, 1.5)
    be1 = jax.random.normal(keys[4], (Ce,), jnp.float32) * 0.1
    m1 = jax.random.normal(keys[5], (Ce,), jnp.float32) * 0.1
    v1 = jax.random.uniform(keys[6], (Ce,), jnp.float32, 0.5, 1.5)

    # out_conv: Conv3d(Ce -> C_out, kernel=(1, ws, 1)) + BN2
    Wconv2 = jax.random.normal(keys[7], (C_out, Ce, ws), jnp.float32) * 0.1
    bconv2 = jax.random.normal(keys[8], (C_out,), jnp.float32) * 0.1
    g2 = jax.random.uniform(keys[9], (C_out,), jnp.float32, 0.5, 1.5)
    be2 = jax.random.normal(keys[10], (C_out,), jnp.float32) * 0.1
    m2 = jax.random.normal(keys[11], (C_out,), jnp.float32) * 0.1
    v2 = jax.random.uniform(keys[12], (C_out,), jnp.float32, 0.5, 1.5)

    # ---- fold inference BN scale/bias into the conv weights ----
    s1 = g1 / jnp.sqrt(v1 + eps)
    b1f = s1 * (bconv1 - m1) + be1
    s2 = g2 / jnp.sqrt(v2 + eps)
    b2f = s2 * (bconv2 - m2) + be2

    I_T = jnp.eye(T, dtype=jnp.float32)
    # channel-mix weights (BN1 scale folded), kron'd with I_T and transposed so
    # the kernel contracts over (c, t) on its K axis with t block-diagonal.
    Wm = jnp.transpose(Wconv1.reshape(Ce, S, C_in), (1, 0, 2)) * s1[None, :, None]
    wmiT = jnp.stack([jnp.kron(Wm[s].T, I_T) for s in range(S)])   # (S, C*T, Ce*T)

    # window-reduction weights (BN2 scale folded), kron'd + transposed:
    # out^T(V, C_out*T) += h^T_w(V, Ce*T) @ w2iT[w]
    W2 = Wconv2 * s2[:, None, None]                                # (C_out, Ce, ws)
    w2iT = jnp.stack([jnp.kron(W2[:, :, w].T, I_T) for w in range(ws)])
                                                                   # (ws, Ce*T, C_out*T)

    # A pre-permuted so the kernel's big matmul is hT = A_cat @ [Y_0;...;Y_{S-1}]
    A_cat = A.reshape(S, Vl, Vl).transpose(1, 0, 2).reshape(Vl, S * Vl)

    bias1r = jnp.repeat(b1f, T).reshape(1, Ce * T)                 # (1, Ce*T)
    bias2r = jnp.repeat(b2f, T).reshape(1, C_out * T)              # (1, C_out*T)

    return dict(
        # kernel-prepped (bf16 matmul operands, f32 biases)
        A_cat_b=A_cat.astype(jnp.bfloat16),
        wmiT_b=wmiT.astype(jnp.bfloat16),
        w2iT_b=w2iT.astype(jnp.bfloat16),
        bias1r=bias1r, bias2r=bias2r,
        # raw (for the pure-JAX reference)
        A=A, Wconv1=Wconv1, bconv1=bconv1, g1=g1, be1=be1, m1=m1, v1=v1,
        Wconv2=Wconv2, bconv2=bconv2, g2=g2, be2=be2, m2=m2, v2=v2,
    )


# ----------------------------------------------------------------------------
# Pure-JAX reference (mirrors the PyTorch forward, inference-mode BN)
# ----------------------------------------------------------------------------
def reference_branch(x, p, *, S, ws, eps=1e-5):
    N, C, T, V = x.shape
    Vl = ws * V
    x_unf = unfold_temporal(x, ws)                               # (N, C, T, Vl)
    agg = jnp.einsum('vu,nctu->nctv', p["A"], x_unf, precision='highest')
    agg = agg.reshape(N, C, T, S, Vl).transpose(0, 3, 1, 2, 4).reshape(N, S * C, T, Vl)
    h = jnp.einsum('ok,nktv->notv', p["Wconv1"], agg, precision='highest')
    h = h + p["bconv1"][None, :, None, None]
    h = (h - p["m1"][None, :, None, None]) / jnp.sqrt(p["v1"][None, :, None, None] + eps) \
        * p["g1"][None, :, None, None] + p["be1"][None, :, None, None]
    h = jnp.maximum(h, 0.0)
    Ce = h.shape[1]
    h = h.reshape(N, Ce, T, ws, V)
    out = jnp.einsum('ocw,nctwv->notv', p["Wconv2"], h, precision='highest')
    out = out + p["bconv2"][None, :, None, None]
    out = (out - p["m2"][None, :, None, None]) / jnp.sqrt(p["v2"][None, :, None, None] + eps) \
        * p["g2"][None, :, None, None] + p["be2"][None, :, None, None]
    return out


# ----------------------------------------------------------------------------
if __name__ == "__main__":
    N, C_in, T, V = 2, 4, 8, 16
    C_out = 16
    num_scales = 3
    window_sizes = [3, 5]
    # window_dilations = [1, 1]  (dilation=1 handled by the unfold helpers)

    # simple ring skeleton graph (binary, symmetric)
    A_binary = np.zeros((V, V), dtype=np.float32)
    for i in range(V):
        A_binary[i, (i + 1) % V] = 1.0
        A_binary[(i + 1) % V, i] = 1.0

    key = jax.random.PRNGKey(0)
    kx, kp = jax.random.split(key)
    x = jax.random.normal(kx, (N, C_in, T, V), dtype=jnp.float32)

    bkeys = jax.random.split(kp, len(window_sizes))
    p3 = make_branch_params(bkeys[0], A_binary, num_scales, 3, C_in, C_out, T)
    p5 = make_branch_params(bkeys[1], A_binary, num_scales, 5, C_in, C_out, T)

    fwd = jax.jit(multiwindow_ms_g3d)
    out = jax.block_until_ready(fwd(x, p3, p5))

    # f32 HIGHEST-precision reference; kernel uses single-pass bf16 MXU matmuls
    # (f32 accumulation), hence the bf16-level comparison tolerance.
    ref = reference_branch(x, p3, S=num_scales, ws=3) + \
          reference_branch(x, p5, S=num_scales, ws=5)
    np.testing.assert_allclose(np.asarray(out), np.asarray(ref),
                               rtol=2e-2, atol=2e-2)
    print("KERNEL_OK")
</pallas_src>

<mosaic_0001>
module attributes {stable_mosaic.version = 11 : i64} {
  func.func @_mw_msg3d_kernel(%arg0: i32, %arg1: memref<1x80x32xbf16, #tpu.memory_space<vmem>>, %arg2: memref<48x144xbf16, #tpu.memory_space<vmem>>, %arg3: memref<80x240xbf16, #tpu.memory_space<vmem>>, %arg4: memref<3x32x32xbf16, #tpu.memory_space<vmem>>, %arg5: memref<3x32x32xbf16, #tpu.memory_space<vmem>>, %arg6: memref<2x1x32xf32, #tpu.memory_space<vmem>>, %arg7: memref<3x32x128xbf16, #tpu.memory_space<vmem>>, %arg8: memref<5x32x128xbf16, #tpu.memory_space<vmem>>, %arg9: memref<1x128xf32, #tpu.memory_space<vmem>>, %arg10: memref<1x16x128xf32, #tpu.memory_space<vmem>>, %arg11: memref<144x32xbf16, #tpu.memory_space<vmem>>, %arg12: memref<240x32xbf16, #tpu.memory_space<vmem>>) attributes {dimension_semantics = [#tpu.dimension_semantics<parallel>], iteration_bounds = array<i64: 2>, scalar_prefetch = 0 : i64, scratch_operands = 2 : i64, tpu.core_type = #tpu.core_type<tc>, window_params = [{transform_indices = @transform_0, window_bounds = array<i64: 1, 80, 32>}, {pipeline_mode = #tpu.pipeline_mode<synchronous>, transform_indices = @transform_1, window_bounds = array<i64: 48, 144>}, {pipeline_mode = #tpu.pipeline_mode<synchronous>, transform_indices = @transform_2, window_bounds = array<i64: 80, 240>}, {pipeline_mode = #tpu.pipeline_mode<synchronous>, transform_indices = @transform_3, window_bounds = array<i64: 3, 32, 32>}, {pipeline_mode = #tpu.pipeline_mode<synchronous>, transform_indices = @transform_4, window_bounds = array<i64: 3, 32, 32>}, {pipeline_mode = #tpu.pipeline_mode<synchronous>, transform_indices = @transform_5, window_bounds = array<i64: 2, 1, 32>}, {pipeline_mode = #tpu.pipeline_mode<synchronous>, transform_indices = @transform_6, window_bounds = array<i64: 3, 32, 128>}, {pipeline_mode = #tpu.pipeline_mode<synchronous>, transform_indices = @transform_7, window_bounds = array<i64: 5, 32, 128>}, {pipeline_mode = #tpu.pipeline_mode<synchronous>, transform_indices = @transform_8, window_bounds = array<i64: 1, 128>}, {transform_indices = @transform_9, window_bounds = array<i64: 1, 16, 128>}]} {
    %c0 = arith.constant 0 : index
    %c0_0 = arith.constant 0 : index
    %c0_1 = arith.constant 0 : index
    %0 = vector.load %arg1[%c0, %c0_0, %c0_1] : memref<1x80x32xbf16, #tpu.memory_space<vmem>>, vector<1x80x32xbf16>
    %1 = vector.shape_cast %0 : vector<1x80x32xbf16> to vector<80x32xbf16>
    %2 = vector.extract_strided_slice %1 {offsets = [16, 0], sizes = [48, 32], strides = [1, 1]} : vector<80x32xbf16> to vector<48x32xbf16>
    %cst = arith.constant 0.000000e+00 : f32
    %3 = vector.broadcast %cst : f32 to vector<16x128xf32>
    %c0_2 = arith.constant 0 : index
    %c0_3 = arith.constant 0 : index
    %c0_4 = arith.constant 0 : index
    %4 = vector.load %arg4[%c0_2, %c0_3, %c0_4] : memref<3x32x32xbf16, #tpu.memory_space<vmem>>, vector<1x32x32xbf16>
    %5 = vector.shape_cast %4 : vector<1x32x32xbf16> to vector<32x32xbf16>
    %cst_5 = arith.constant dense<0.000000e+00> : vector<48x32xf32>
    %6 = tpu.matmul %2, %5, %cst_5 {dimension_numbers = #tpu.dot_dimension_numbers<[1], [0], [0], [1], [0, 0, 1, 1], [], []>} : vector<48x32xbf16>, vector<32x32xbf16>, vector<48x32xf32> -> vector<48x32xf32>
    %7 = arith.truncf %6 : vector<48x32xf32> to vector<48x32xbf16>
    %c0_6 = arith.constant 0 : index
    %c0_7 = arith.constant 0 : index
    %8 = vector.load %arg11[%c0_6, %c0_7] : memref<144x32xbf16, #tpu.memory_space<vmem>>, vector<48x32xbf16>
    tpu.vector_store %arg11[%c0_6, %c0_7], %7 {strides = array<i32>} : memref<144x32xbf16, #tpu.memory_space<vmem>>, vector<48x32xbf16>,
    %c1 = arith.constant 1 : index
    %c0_8 = arith.constant 0 : index
    %c0_9 = arith.constant 0 : index
    %9 = vector.load %arg4[%c1, %c0_8, %c0_9] : memref<3x32x32xbf16, #tpu.memory_space<vmem>>, vector<1x32x32xbf16>
    %10 = vector.shape_cast %9 : vector<1x32x32xbf16> to vector<32x32xbf16>
    %cst_10 = arith.constant dense<0.000000e+00> : vector<48x32xf32>
    %11 = tpu.matmul %2, %10, %cst_10 {dimension_numbers = #tpu.dot_dimension_numbers<[1], [0], [0], [1], [0, 0, 1, 1], [], []>} : vector<48x32xbf16>, vector<32x32xbf16>, vector<48x32xf32> -> vector<48x32xf32>
    %12 = arith.truncf %11 : vector<48x32xf32> to vector<48x32xbf16>
    %c48 = arith.constant 48 : index
    %c0_11 = arith.constant 0 : index
    %13 = vector.load %arg11[%c48, %c0_11] : memref<144x32xbf16, #tpu.memory_space<vmem>>, vector<48x32xbf16>
    tpu.vector_store %arg11[%c48, %c0_11], %12 {strides = array<i32>} : memref<144x32xbf16, #tpu.memory_space<vmem>>, vector<48x32xbf16>,
    %c2 = arith.constant 2 : index
    %c0_12 = arith.constant 0 : index
    %c0_13 = arith.constant 0 : index
    %14 = vector.load %arg4[%c2, %c0_12, %c0_13] : memref<3x32x32xbf16, #tpu.memory_space<vmem>>, vector<1x32x32xbf16>
    %15 = vector.shape_cast %14 : vector<1x32x32xbf16> to vector<32x32xbf16>
    %cst_14 = arith.constant dense<0.000000e+00> : vector<48x32xf32>
    %16 = tpu.matmul %2, %15, %cst_14 {dimension_numbers = #tpu.dot_dimension_numbers<[1], [0], [0], [1], [0, 0, 1, 1], [], []>} : vector<48x32xbf16>, vector<32x32xbf16>, vector<48x32xf32> -> vector<48x32xf32>
    %17 = arith.truncf %16 : vector<48x32xf32> to vector<48x32xbf16>
    %c96 = arith.constant 96 : index
    %c0_15 = arith.constant 0 : index
    %18 = vector.load %arg11[%c96, %c0_15] : memref<144x32xbf16, #tpu.memory_space<vmem>>, vector<48x32xbf16>
    tpu.vector_store %arg11[%c96, %c0_15], %17 {strides = array<i32>} : memref<144x32xbf16, #tpu.memory_space<vmem>>, vector<48x32xbf16>,
    %c0_16 = arith.constant 0 : index
    %c0_17 = arith.constant 0 : index
    %19 = vector.load %arg2[%c0_16, %c0_17] : memref<48x144xbf16, #tpu.memory_space<vmem>>, vector<48x144xbf16>
    %c0_18 = arith.constant 0 : index
    %c0_19 = arith.constant 0 : index
    %20 = vector.load %arg11[%c0_18, %c0_19] : memref<144x32xbf16, #tpu.memory_space<vmem>>, vector<144x32xbf16>
    %cst_20 = arith.constant dense<0.000000e+00> : vector<48x32xf32>
    %21 = tpu.matmul %19, %20, %cst_20 {dimension_numbers = #tpu.dot_dimension_numbers<[1], [0], [0], [1], [0, 0, 1, 1], [], []>} : vector<48x144xbf16>, vector<144x32xbf16>, vector<48x32xf32> -> vector<48x32xf32>
    %c0_21 = arith.constant 0 : index
    %c0_22 = arith.constant 0 : index
    %c0_23 = arith.constant 0 : index
    %22 = vector.load %arg6[%c0_21, %c0_22, %c0_23] : memref<2x1x32xf32, #tpu.memory_space<vmem>>, vector<1x1x32xf32>
    %23 = vector.shape_cast %22 : vector<1x1x32xf32> to vector<1x32xf32>
    %24 = vector.broadcast %23 : vector<1x32xf32> to vector<48x32xf32>
    %25 = arith.addf %21, %24 : vector<48x32xf32>
    %cst_24 = arith.constant 0.000000e+00 : f32
    %26 = vector.broadcast %cst_24 : f32 to vector<48x32xf32>
    %27 = arith.maximumf %25, %26 : vector<48x32xf32>
    %28 = arith.truncf %27 : vector<48x32xf32> to vector<48x32xbf16>
    %29 = vector.extract_strided_slice %28 {offsets = [0, 0], sizes = [16, 32], strides = [1, 1]} : vector<48x32xbf16> to vector<16x32xbf16>
    %c0_25 = arith.constant 0 : index
    %c0_26 = arith.constant 0 : index
    %c0_27 = arith.constant 0 : index
    %30 = vector.load %arg7[%c0_25, %c0_26, %c0_27] : memref<3x32x128xbf16, #tpu.memory_space<vmem>>, vector<1x32x128xbf16>
    %31 = vector.shape_cast %30 : vector<1x32x128xbf16> to vector<32x128xbf16>
    %cst_28 = arith.constant dense<0.000000e+00> : vector<16x128xf32>
    %32 = tpu.matmul %29, %31, %cst_28 {dimension_numbers = #tpu.dot_dimension_numbers<[1], [0], [0], [1], [0, 0, 1, 1], [], []>} : vector<16x32xbf16>, vector<32x128xbf16>, vector<16x128xf32> -> vector<16x128xf32>
    %33 = arith.addf %3, %32 : vector<16x128xf32>
    %34 = vector.extract_strided_slice %28 {offsets = [16, 0], sizes = [16, 32], strides = [1, 1]} : vector<48x32xbf16> to vector<16x32xbf16>
    %c1_29 = arith.constant 1 : index
    %c0_30 = arith.constant 0 : index
    %c0_31 = arith.constant 0 : index
    %35 = vector.load %arg7[%c1_29, %c0_30, %c0_31] : memref<3x32x128xbf16, #tpu.memory_space<vmem>>, vector<1x32x128xbf16>
    %36 = vector.shape_cast %35 : vector<1x32x128xbf16> to vector<32x128xbf16>
    %cst_32 = arith.constant dense<0.000000e+00> : vector<16x128xf32>
    %37 = tpu.matmul %34, %36, %cst_32 {dimension_numbers = #tpu.dot_dimension_numbers<[1], [0], [0], [1], [0, 0, 1, 1], [], []>} : vector<16x32xbf16>, vector<32x128xbf16>, vector<16x128xf32> -> vector<16x128xf32>
    %38 = arith.addf %33, %37 : vector<16x128xf32>
    %39 = vector.extract_strided_slice %28 {offsets = [32, 0], sizes = [16, 32], strides = [1, 1]} : vector<48x32xbf16> to vector<16x32xbf16>
    %c2_33 = arith.constant 2 : index
    %c0_34 = arith.constant 0 : index
    %c0_35 = arith.constant 0 : index
    %40 = vector.load %arg7[%c2_33, %c0_34, %c0_35] : memref<3x32x128xbf16, #tpu.memory_space<vmem>>, vector<1x32x128xbf16>
    %41 = vector.shape_cast %40 : vector<1x32x128xbf16> to vector<32x128xbf16>
    %cst_36 = arith.constant dense<0.000000e+00> : vector<16x128xf32>
    %42 = tpu.matmul %39, %41, %cst_36 {dimension_numbers = #tpu.dot_dimension_numbers<[1], [0], [0], [1], [0, 0, 1, 1], [], []>} : vector<16x32xbf16>, vector<32x128xbf16>, vector<16x128xf32> -> vector<16x128xf32>
    %43 = arith.addf %38, %42 : vector<16x128xf32>
    %c0_37 = arith.constant 0 : index
    %c0_38 = arith.constant 0 : index
    %c0_39 = arith.constant 0 : index
    %44 = vector.load %arg5[%c0_37, %c0_38, %c0_39] : memref<3x32x32xbf16, #tpu.memory_space<vmem>>, vector<1x32x32xbf16>
    %45 = vector.shape_cast %44 : vector<1x32x32xbf16> to vector<32x32xbf16>
    %cst_40 = arith.constant dense<0.000000e+00> : vector<80x32xf32>
    %46 = tpu.matmul %1, %45, %cst_40 {dimension_numbers = #tpu.dot_dimension_numbers<[1], [0], [0], [1], [0, 0, 1, 1], [], []>} : vector<80x32xbf16>, vector<32x32xbf16>, vector<80x32xf32> -> vector<80x32xf32>
    %47 = arith.truncf %46 : vector<80x32xf32> to vector<80x32xbf16>
    %c0_41 = arith.constant 0 : index
    %c0_42 = arith.constant 0 : index
    %48 = vector.load %arg12[%c0_41, %c0_42] : memref<240x32xbf16, #tpu.memory_space<vmem>>, vector<80x32xbf16>
    tpu.vector_store %arg12[%c0_41, %c0_42], %47 {strides = array<i32>} : memref<240x32xbf16, #tpu.memory_space<vmem>>, vector<80x32xbf16>,
    %c1_43 = arith.constant 1 : index
    %c0_44 = arith.constant 0 : index
    %c0_45 = arith.constant 0 : index
    %49 = vector.load %arg5[%c1_43, %c0_44, %c0_45] : memref<3x32x32xbf16, #tpu.memory_space<vmem>>, vector<1x32x32xbf16>
    %50 = vector.shape_cast %49 : vector<1x32x32xbf16> to vector<32x32xbf16>
    %cst_46 = arith.constant dense<0.000000e+00> : vector<80x32xf32>
    %51 = tpu.matmul %1, %50, %cst_46 {dimension_numbers = #tpu.dot_dimension_numbers<[1], [0], [0], [1], [0, 0, 1, 1], [], []>} : vector<80x32xbf16>, vector<32x32xbf16>, vector<80x32xf32> -> vector<80x32xf32>
    %52 = arith.truncf %51 : vector<80x32xf32> to vector<80x32xbf16>
    %c80 = arith.constant 80 : index
    %c0_47 = arith.constant 0 : index
    %53 = vector.load %arg12[%c80, %c0_47] : memref<240x32xbf16, #tpu.memory_space<vmem>>, vector<80x32xbf16>
    tpu.vector_store %arg12[%c80, %c0_47], %52 {strides = array<i32>} : memref<240x32xbf16, #tpu.memory_space<vmem>>, vector<80x32xbf16>,
    %c2_48 = arith.constant 2 : index
    %c0_49 = arith.constant 0 : index
    %c0_50 = arith.constant 0 : index
    %54 = vector.load %arg5[%c2_48, %c0_49, %c0_50] : memref<3x32x32xbf16, #tpu.memory_space<vmem>>, vector<1x32x32xbf16>
    %55 = vector.shape_cast %54 : vector<1x32x32xbf16> to vector<32x32xbf16>
    %cst_51 = arith.constant dense<0.000000e+00> : vector<80x32xf32>
    %56 = tpu.matmul %1, %55, %cst_51 {dimension_numbers = #tpu.dot_dimension_numbers<[1], [0], [0], [1], [0, 0, 1, 1], [], []>} : vector<80x32xbf16>, vector<32x32xbf16>, vector<80x32xf32> -> vector<80x32xf32>
    %57 = arith.truncf %56 : vector<80x32xf32> to vector<80x32xbf16>
    %c160 = arith.constant 160 : index
    %c0_52 = arith.constant 0 : index
    %58 = vector.load %arg12[%c160, %c0_52] : memref<240x32xbf16, #tpu.memory_space<vmem>>, vector<80x32xbf16>
    tpu.vector_store %arg12[%c160, %c0_52], %57 {strides = array<i32>} : memref<240x32xbf16, #tpu.memory_space<vmem>>, vector<80x32xbf16>,
    %c0_53 = arith.constant 0 : index
    %c0_54 = arith.constant 0 : index
    %59 = vector.load %arg3[%c0_53, %c0_54] : memref<80x240xbf16, #tpu.memory_space<vmem>>, vector<80x240xbf16>
    %c0_55 = arith.constant 0 : index
    %c0_56 = arith.constant 0 : index
    %60 = vector.load %arg12[%c0_55, %c0_56] : memref<240x32xbf16, #tpu.memory_space<vmem>>, vector<240x32xbf16>
    %cst_57 = arith.constant dense<0.000000e+00> : vector<80x32xf32>
    %61 = tpu.matmul %59, %60, %cst_57 {dimension_numbers = #tpu.dot_dimension_numbers<[1], [0], [0], [1], [0, 0, 1, 1], [], []>} : vector<80x240xbf16>, vector<240x32xbf16>, vector<80x32xf32> -> vector<80x32xf32>
    %c1_58 = arith.constant 1 : index
    %c0_59 = arith.constant 0 : index
    %c0_60 = arith.constant 0 : index
    %62 = vector.load %arg6[%c1_58, %c0_59, %c0_60] : memref<2x1x32xf32, #tpu.memory_space<vmem>>, vector<1x1x32xf32>
    %63 = vector.shape_cast %62 : vector<1x1x32xf32> to vector<1x32xf32>
    %64 = vector.broadcast %63 : vector<1x32xf32> to vector<80x32xf32>
    %65 = arith.addf %61, %64 : vector<80x32xf32>
    %cst_61 = arith.constant 0.000000e+00 : f32
    %66 = vector.broadcast %cst_61 : f32 to vector<80x32xf32>
    %67 = arith.maximumf %65, %66 : vector<80x32xf32>
    %68 = arith.truncf %67 : vector<80x32xf32> to vector<80x32xbf16>
    %69 = vector.extract_strided_slice %68 {offsets = [0, 0], sizes = [16, 32], strides = [1, 1]} : vector<80x32xbf16> to vector<16x32xbf16>
    %c0_62 = arith.constant 0 : index
    %c0_63 = arith.constant 0 : index
    %c0_64 = arith.constant 0 : index
    %70 = vector.load %arg8[%c0_62, %c0_63, %c0_64] : memref<5x32x128xbf16, #tpu.memory_space<vmem>>, vector<1x32x128xbf16>
    %71 = vector.shape_cast %70 : vector<1x32x128xbf16> to vector<32x128xbf16>
    %cst_65 = arith.constant dense<0.000000e+00> : vector<16x128xf32>
    %72 = tpu.matmul %69, %71, %cst_65 {dimension_numbers = #tpu.dot_dimension_numbers<[1], [0], [0], [1], [0, 0, 1, 1], [], []>} : vector<16x32xbf16>, vector<32x128xbf16>, vector<16x128xf32> -> vector<16x128xf32>
    %73 = arith.addf %43, %72 : vector<16x128xf32>
    %74 = vector.extract_strided_slice %68 {offsets = [16, 0], sizes = [16, 32], strides = [1, 1]} : vector<80x32xbf16> to vector<16x32xbf16>
    %c1_66 = arith.constant 1 : index
    %c0_67 = arith.constant 0 : index
    %c0_68 = arith.constant 0 : index
    %75 = vector.load %arg8[%c1_66, %c0_67, %c0_68] : memref<5x32x128xbf16, #tpu.memory_space<vmem>>, vector<1x32x128xbf16>
    %76 = vector.shape_cast %75 : vector<1x32x128xbf16> to vector<32x128xbf16>
    %cst_69 = arith.constant dense<0.000000e+00> : vector<16x128xf32>
    %77 = tpu.matmul %74, %76, %cst_69 {dimension_numbers = #tpu.dot_dimension_numbers<[1], [0], [0], [1], [0, 0, 1, 1], [], []>} : vector<16x32xbf16>, vector<32x128xbf16>, vector<16x128xf32> -> vector<16x128xf32>
    %78 = arith.addf %73, %77 : vector<16x128xf32>
    %79 = vector.extract_strided_slice %68 {offsets = [32, 0], sizes = [16, 32], strides = [1, 1]} : vector<80x32xbf16> to vector<16x32xbf16>
    %c2_70 = arith.constant 2 : index
    %c0_71 = arith.constant 0 : index
    %c0_72 = arith.constant 0 : index
    %80 = vector.load %arg8[%c2_70, %c0_71, %c0_72] : memref<5x32x128xbf16, #tpu.memory_space<vmem>>, vector<1x32x128xbf16>
    %81 = vector.shape_cast %80 : vector<1x32x128xbf16> to vector<32x128xbf16>
    %cst_73 = arith.constant dense<0.000000e+00> : vector<16x128xf32>
    %82 = tpu.matmul %79, %81, %cst_73 {dimension_numbers = #tpu.dot_dimension_numbers<[1], [0], [0], [1], [0, 0, 1, 1], [], []>} : vector<16x32xbf16>, vector<32x128xbf16>, vector<16x128xf32> -> vector<16x128xf32>
    %83 = arith.addf %78, %82 : vector<16x128xf32>
    %84 = vector.extract_strided_slice %68 {offsets = [48, 0], sizes = [16, 32], strides = [1, 1]} : vector<80x32xbf16> to vector<16x32xbf16>
    %c3 = arith.constant 3 : index
    %c0_74 = arith.constant 0 : index
    %c0_75 = arith.constant 0 : index
    %85 = vector.load %arg8[%c3, %c0_74, %c0_75] : memref<5x32x128xbf16, #tpu.memory_space<vmem>>, vector<1x32x128xbf16>
    %86 = vector.shape_cast %85 : vector<1x32x128xbf16> to vector<32x128xbf16>
    %cst_76 = arith.constant dense<0.000000e+00> : vector<16x128xf32>
    %87 = tpu.matmul %84, %86, %cst_76 {dimension_numbers = #tpu.dot_dimension_numbers<[1], [0], [0], [1], [0, 0, 1, 1], [], []>} : vector<16x32xbf16>, vector<32x128xbf16>, vector<16x128xf32> -> vector<16x128xf32>
    %88 = arith.addf %83, %87 : vector<16x128xf32>
    %89 = vector.extract_strided_slice %68 {offsets = [64, 0], sizes = [16, 32], strides = [1, 1]} : vector<80x32xbf16> to vector<16x32xbf16>
    %c4 = arith.constant 4 : index
    %c0_77 = arith.constant 0 : index
    %c0_78 = arith.constant 0 : index
    %90 = vector.load %arg8[%c4, %c0_77, %c0_78] : memref<5x32x128xbf16, #tpu.memory_space<vmem>>, vector<1x32x128xbf16>
    %91 = vector.shape_cast %90 : vector<1x32x128xbf16> to vector<32x128xbf16>
    %cst_79 = arith.constant dense<0.000000e+00> : vector<16x128xf32>
    %92 = tpu.matmul %89, %91, %cst_79 {dimension_numbers = #tpu.dot_dimension_numbers<[1], [0], [0], [1], [0, 0, 1, 1], [], []>} : vector<16x32xbf16>, vector<32x128xbf16>, vector<16x128xf32> -> vector<16x128xf32>
    %93 = arith.addf %88, %92 : vector<16x128xf32>
    %c0_80 = arith.constant 0 : index
    %c0_81 = arith.constant 0 : index
    %94 = vector.load %arg9[%c0_80, %c0_81] : memref<1x128xf32, #tpu.memory_space<vmem>>, vector<1x128xf32>
    %95 = vector.broadcast %94 : vector<1x128xf32> to vector<16x128xf32>
    %96 = arith.addf %93, %95 : vector<16x128xf32>
    %c0_82 = arith.constant 0 : index
    %c0_83 = arith.constant 0 : index
    %c0_84 = arith.constant 0 : index
    %97 = vector.load %arg10[%c0_82, %c0_83, %c0_84] : memref<1x16x128xf32, #tpu.memory_space<vmem>>, vector<1x16x128xf32>
    %98 = vector.shape_cast %97 : vector<1x16x128xf32> to vector<16x128xf32>
    %99 = vector.shape_cast %96 : vector<16x128xf32> to vector<1x16x128xf32>
    tpu.vector_store %arg10[%c0_82, %c0_83, %c0_84], %99 {strides = array<i32>} : memref<1x16x128xf32, #tpu.memory_space<vmem>>, vector<1x16x128xf32>,
    return
  }
  func.func @transform_0(%arg0: i32) -> (i32, i32, i32) {
    %c0_i32 = arith.constant 0 : i32
    %c0_i32_0 = arith.constant 0 : i32
    %c0_i32_1 = arith.constant 0 : i32
    return %arg0, %c0_i32, %c0_i32_0 : i32, i32, i32
  }
  func.func @transform_1(%arg0: i32) -> (i32, i32) {
    %c0_i32 = arith.constant 0 : i32
    %c0_i32_0 = arith.constant 0 : i32
    %c0_i32_1 = arith.constant 0 : i32
    return %c0_i32, %c0_i32_0 : i32, i32
  }
  func.func @transform_2(%arg0: i32) -> (i32, i32) {
    %c0_i32 = arith.constant 0 : i32
    %c0_i32_0 = arith.constant 0 : i32
    %c0_i32_1 = arith.constant 0 : i32
    return %c0_i32, %c0_i32_0 : i32, i32
  }
  func.func @transform_3(%arg0: i32) -> (i32, i32, i32) {
    %c0_i32 = arith.constant 0 : i32
    %c0_i32_0 = arith.constant 0 : i32
    %c0_i32_1 = arith.constant 0 : i32
    %c0_i32_2 = arith.constant 0 : i32
    return %c0_i32, %c0_i32_0, %c0_i32_1 : i32, i32, i32
  }
  func.func @transform_4(%arg0: i32) -> (i32, i32, i32) {
    %c0_i32 = arith.constant 0 : i32
    %c0_i32_0 = arith.constant 0 : i32
    %c0_i32_1 = arith.constant 0 : i32
    %c0_i32_2 = arith.constant 0 : i32
    return %c0_i32, %c0_i32_0, %c0_i32_1 : i32, i32, i32
  }
  func.func @transform_5(%arg0: i32) -> (i32, i32, i32) {
    %c0_i32 = arith.constant 0 : i32
    %c0_i32_0 = arith.constant 0 : i32
    %c0_i32_1 = arith.constant 0 : i32
    %c0_i32_2 = arith.constant 0 : i32
    return %c0_i32, %c0_i32_0, %c0_i32_1 : i32, i32, i32
  }
  func.func @transform_6(%arg0: i32) -> (i32, i32, i32) {
    %c0_i32 = arith.constant 0 : i32
    %c0_i32_0 = arith.constant 0 : i32
    %c0_i32_1 = arith.constant 0 : i32
    %c0_i32_2 = arith.constant 0 : i32
    return %c0_i32, %c0_i32_0, %c0_i32_1 : i32, i32, i32
  }
  func.func @transform_7(%arg0: i32) -> (i32, i32, i32) {
    %c0_i32 = arith.constant 0 : i32
    %c0_i32_0 = arith.constant 0 : i32
    %c0_i32_1 = arith.constant 0 : i32
    %c0_i32_2 = arith.constant 0 : i32
    return %c0_i32, %c0_i32_0, %c0_i32_1 : i32, i32, i32
  }
  func.func @transform_8(%arg0: i32) -> (i32, i32) {
    %c0_i32 = arith.constant 0 : i32
    %c0_i32_0 = arith.constant 0 : i32
    %c0_i32_1 = arith.constant 0 : i32
    return %c0_i32, %c0_i32_0 : i32, i32
  }
  func.func @transform_9(%arg0: i32) -> (i32, i32, i32) {
    %c0_i32 = arith.constant 0 : i32
    %c0_i32_0 = arith.constant 0 : i32
    %c0_i32_1 = arith.constant 0 : i32
    return %arg0, %c0_i32, %c0_i32_0 : i32, i32, i32
  }
}

</mosaic_0001>

<llo_original>
// kernel: multiwindow_ms_g3d.1
$region0: #{multiwindow_ms_g3d.1}
  #allocation0 [shape = 'u32[]', space=smem, size = 0x4, offset = 0x4, fixed_abs, tag = 'smem constant byte address 0x4 - core index']
  #allocation1 [shape = 'u32[144,128]{1,0:T(1,128)}', space=vmem, size = 0x12000, scoped, tag = 'internal scratch']
  #allocation2 [shape = 'bf16[144,32]{1,0:T(16,128)(2,1)}', space=vmem, size = 0x9000, scoped, tag = 'scratch operand']
  #allocation3 [shape = 'bf16[240,32]{1,0:T(16,128)(2,1)}', space=vmem, size = 0xf000, scoped, tag = 'scratch operand']
  %s0 = inlined_call_operand.vmem [shape: bf16[2,80,32], index: 0, kind: input, shape index: {}]
  %s1 = inlined_call_operand.vmem [shape: bf16[48,144], index: 1, kind: input, shape index: {}]
  %s2 = inlined_call_operand.vmem [shape: bf16[80,240], index: 2, kind: input, shape index: {}]
  %s3 = inlined_call_operand.vmem [shape: bf16[3,32,32], index: 3, kind: input, shape index: {}]
  %s4 = inlined_call_operand.vmem [shape: bf16[3,32,32], index: 4, kind: input, shape index: {}]
  %s5 = inlined_call_operand.vmem [shape: f32[2,1,32], index: 5, kind: input, shape index: {}]
  %s6 = inlined_call_operand.vmem [shape: bf16[3,32,128], index: 6, kind: input, shape index: {}]
  %s7 = inlined_call_operand.vmem [shape: bf16[5,32,128], index: 7, kind: input, shape index: {}]
  %s8 = inlined_call_operand.vmem [shape: f32[1,128], index: 8, kind: input, shape index: {}]
  %s9 = inlined_call_operand.vmem [shape: f32[2,16,128], index: 9, kind: output, shape index: {}]
  %s10 = sld [smem:[#allocation0]]
  $region69: #{multiwindow_ms_g3d.1} parent=0
    _
  %s12 = ssub.s32 1, %s10
  %s13 = scalar_select 0, %s12, %s10
  loop: start=0, step=1, limit=4
  $region2: #{multiwindow_ms_g3d.1} parent=0 // loop_pre_header
    _
  $region3: #{multiwindow_ms_g3d.1} parent=0 // loop_header
    %s15 = sphi 0, %s19
    %p16 = scmp.ge.s32.totalorder %s15, 4
    %s25 = sphi 0, %s27
    %s28 = sphi 0, %s25
    %s29 = sphi 0, %s28
    %s45 = sphi 0, %s29
    %s49 = sphi 0, %s49
    %s51 = sphi 0, %s49
    %s52 = sphi 0, %s51
    %s66 = sphi 0, %s52
    %s70 = sphi 0, %s70
    %s72 = sphi 0, %s70
    %s73 = sphi 0, %s72
    %s87 = sphi 0, %s73
    %s91 = sphi 0, %s91
    %s93 = sphi 0, %s91
    %s94 = sphi 0, %s93
    %s108 = sphi 0, %s94
    %s112 = sphi 0, %s112
    %s114 = sphi 0, %s112
    %s115 = sphi 0, %s114
    %s129 = sphi 0, %s115
    %s133 = sphi 0, %s133
    %s135 = sphi 0, %s133
    %s136 = sphi 0, %s135
    %s150 = sphi 0, %s136
    %s154 = sphi 0, %s154
    %s156 = sphi 0, %s154
    %s157 = sphi 0, %s156
    %s171 = sphi 0, %s157
    %s175 = sphi 0, %s175
    %s177 = sphi 0, %s175
    %s178 = sphi 0, %s177
    %s192 = sphi 0, %s178
    %s196 = sphi 0, %s196
    %s198 = sphi 0, %s196
    %s199 = sphi 0, %s198
    %s213 = sphi 0, %s199
    %s219 = sphi 0, %s221
    %s222 = sphi 0, %s219
    %s223 = sphi 0, %s222
    %s239 = sphi 0, %s223
  $region4: #{multiwindow_ms_g3d.1} parent=0 // loop_header_branch
    %18 = sbr.rel (%p16) target = $region8
  $region5: #{multiwindow_ms_g3d.1} parent=0 // loop_body
    %s20 = ssub.s32 %s15, 1
    %s21 = ssub.s32 %s15, 2
    %s22 = sadd.s32 %s15, 1
    %s23 = ssub.s32 %s15, %s22
    %p24 = scmp.eq.s32.totalorder %s23, 0
    %s26 = sadd.s32 %s25, 1
    %s27 = scalar_select %p24, %s25, %s26
    %p30 = pneg %p24
    %p31 = scmp.eq.s32.totalorder %s15, 1
    %p32 = por %p30, %p31
    %p33 = scmp.ne.s32.totalorder %s25, %s28
    %p34 = scmp.eq.s32.totalorder %s15, 0
    %p35 = por %p33, %p34
    %p36 = scmp.ne.s32.totalorder %s25, %s28
    %p37 = scmp.eq.s32.totalorder %s20, 1
    %p38 = por %p36, %p37
    %p39 = scmp.ne.s32.totalorder %s28, %s29
    %p40 = scmp.eq.s32.totalorder %s20, 0
    %p41 = por %p39, %p40
    %p42 = scmp.ne.s32.totalorder %s28, %s29
    %p43 = scmp.eq.s32.totalorder %s21, 1
    %p44 = por %p42, %p43
    %p46 = scmp.ne.s32.totalorder %s29, %s45
    %p47 = scmp.eq.s32.totalorder %s21, 0
    %p48 = por %p46, %p47
    %s50 = sadd.s32 %s49, 1
    %p53 = scmp.eq.s32.totalorder %s15, 1
    %p54 = scmp.ne.s32.totalorder %s49, %s51
    %p55 = scmp.eq.s32.totalorder %s15, 0
    %p56 = por %p54, %p55
    %p57 = scmp.ne.s32.totalorder %s49, %s51
    %p58 = scmp.eq.s32.totalorder %s20, 1
    %p59 = por %p57, %p58
    %p60 = scmp.ne.s32.totalorder %s51, %s52
    %p61 = scmp.eq.s32.totalorder %s20, 0
    %p62 = por %p60, %p61
    %p63 = scmp.ne.s32.totalorder %s51, %s52
    %p64 = scmp.eq.s32.totalorder %s21, 1
    %p65 = por %p63, %p64
    %p67 = scmp.ne.s32.totalorder %s52, %s66
    %p68 = scmp.eq.s32.totalorder %s21, 0
    %p69 = por %p67, %p68
    %s71 = sadd.s32 %s70, 1
    %p74 = scmp.eq.s32.totalorder %s15, 1
    %p75 = scmp.ne.s32.totalorder %s70, %s72
    %p76 = scmp.eq.s32.totalorder %s15, 0
    %p77 = por %p75, %p76
    %p78 = scmp.ne.s32.totalorder %s70, %s72
    %p79 = scmp.eq.s32.totalorder %s20, 1
    %p80 = por %p78, %p79
    %p81 = scmp.ne.s32.totalorder %s72, %s73
    %p82 = scmp.eq.s32.totalorder %s20, 0
    %p83 = por %p81, %p82
    %p84 = scmp.ne.s32.totalorder %s72, %s73
    %p85 = scmp.eq.s32.totalorder %s21, 1
    %p86 = por %p84, %p85
    %p88 = scmp.ne.s32.totalorder %s73, %s87
    %p89 = scmp.eq.s32.totalorder %s21, 0
    %p90 = por %p88, %p89
    %s92 = sadd.s32 %s91, 1
    %p95 = scmp.eq.s32.totalorder %s15, 1
    %p96 = scmp.ne.s32.totalorder %s91, %s93
    %p97 = scmp.eq.s32.totalorder %s15, 0
    %p98 = por %p96, %p97
    %p99 = scmp.ne.s32.totalorder %s91, %s93
    %p100 = scmp.eq.s32.totalorder %s20, 1
    %p101 = por %p99, %p100
    %p102 = scmp.ne.s32.totalorder %s93, %s94
    %p103 = scmp.eq.s32.totalorder %s20, 0
    %p104 = por %p102, %p103
    %p105 = scmp.ne.s32.totalorder %s93, %s94
    %p106 = scmp.eq.s32.totalorder %s21, 1
    %p107 = por %p105, %p106
    %p109 = scmp.ne.s32.totalorder %s94, %s108
    %p110 = scmp.eq.s32.totalorder %s21, 0
    %p111 = por %p109, %p110
    %s113 = sadd.s32 %s112, 1
    %p116 = scmp.eq.s32.totalorder %s15, 1
    %p117 = scmp.ne.s32.totalorder %s112, %s114
    %p118 = scmp.eq.s32.totalorder %s15, 0
    %p119 = por %p117, %p118
    %p120 = scmp.ne.s32.totalorder %s112, %s114
    %p121 = scmp.eq.s32.totalorder %s20, 1
    %p122 = por %p120, %p121
    %p123 = scmp.ne.s32.totalorder %s114, %s115
    %p124 = scmp.eq.s32.totalorder %s20, 0
    %p125 = por %p123, %p124
    %p126 = scmp.ne.s32.totalorder %s114, %s115
    %p127 = scmp.eq.s32.totalorder %s21, 1
    %p128 = por %p126, %p127
    %p130 = scmp.ne.s32.totalorder %s115, %s129
    %p131 = scmp.eq.s32.totalorder %s21, 0
    %p132 = por %p130, %p131
    %s134 = sadd.s32 %s133, 1
    %p137 = scmp.eq.s32.totalorder %s15, 1
    %p138 = scmp.ne.s32.totalorder %s133, %s135
    %p139 = scmp.eq.s32.totalorder %s15, 0
    %p140 = por %p138, %p139
    %p141 = scmp.ne.s32.totalorder %s133, %s135
    %p142 = scmp.eq.s32.totalorder %s20, 1
    %p143 = por %p141, %p142
    %p144 = scmp.ne.s32.totalorder %s135, %s136
    %p145 = scmp.eq.s32.totalorder %s20, 0
    %p146 = por %p144, %p145
    %p147 = scmp.ne.s32.totalorder %s135, %s136
    %p148 = scmp.eq.s32.totalorder %s21, 1
    %p149 = por %p147, %p148
    %p151 = scmp.ne.s32.totalorder %s136, %s150
    %p152 = scmp.eq.s32.totalorder %s21, 0
    %p153 = por %p151, %p152
    %s155 = sadd.s32 %s154, 1
    %p158 = scmp.eq.s32.totalorder %s15, 1
    %p159 = scmp.ne.s32.totalorder %s154, %s156
    %p160 = scmp.eq.s32.totalorder %s15, 0
    %p161 = por %p159, %p160
    %p162 = scmp.ne.s32.totalorder %s154, %s156
    %p163 = scmp.eq.s32.totalorder %s20, 1
    %p164 = por %p162, %p163
    %p165 = scmp.ne.s32.totalorder %s156, %s157
    %p166 = scmp.eq.s32.totalorder %s20, 0
    %p167 = por %p165, %p166
    %p168 = scmp.ne.s32.totalorder %s156, %s157
    %p169 = scmp.eq.s32.totalorder %s21, 1
    %p170 = por %p168, %p169
    %p172 = scmp.ne.s32.totalorder %s157, %s171
    %p173 = scmp.eq.s32.totalorder %s21, 0
    %p174 = por %p172, %p173
    %s176 = sadd.s32 %s175, 1
    %p179 = scmp.eq.s32.totalorder %s15, 1
    %p180 = scmp.ne.s32.totalorder %s175, %s177
    %p181 = scmp.eq.s32.totalorder %s15, 0
    %p182 = por %p180, %p181
    %p183 = scmp.ne.s32.totalorder %s175, %s177
    %p184 = scmp.eq.s32.totalorder %s20, 1
    %p185 = por %p183, %p184
    %p186 = scmp.ne.s32.totalorder %s177, %s178
    %p187 = scmp.eq.s32.totalorder %s20, 0
    %p188 = por %p186, %p187
    %p189 = scmp.ne.s32.totalorder %s177, %s178
    %p190 = scmp.eq.s32.totalorder %s21, 1
    %p191 = por %p189, %p190
    %p193 = scmp.ne.s32.totalorder %s178, %s192
    %p194 = scmp.eq.s32.totalorder %s21, 0
    %p195 = por %p193, %p194
    %s197 = sadd.s32 %s196, 1
    %p200 = scmp.eq.s32.totalorder %s15, 1
    %p201 = scmp.ne.s32.totalorder %s196, %s198
    %p202 = scmp.eq.s32.totalorder %s15, 0
    %p203 = por %p201, %p202
    %p204 = scmp.ne.s32.totalorder %s196, %s198
    %p205 = scmp.eq.s32.totalorder %s20, 1
    %p206 = por %p204, %p205
    %p207 = scmp.ne.s32.totalorder %s198, %s199
    %p208 = scmp.eq.s32.totalorder %s20, 0
    %p209 = por %p207, %p208
    %p210 = scmp.ne.s32.totalorder %s198, %s199
    %p211 = scmp.eq.s32.totalorder %s21, 1
    %p212 = por %p210, %p211
    %p214 = scmp.ne.s32.totalorder %s199, %s213
    %p215 = scmp.eq.s32.totalorder %s21, 0
    %p216 = por %p214, %p215
    %s217 = ssub.s32 %s15, %s22
    %p218 = scmp.eq.s32.totalorder %s217, 0
    %s220 = sadd.s32 %s219, 1
    %s221 = scalar_select %p218, %s219, %s220
    %p224 = pneg %p218
    %p225 = scmp.eq.s32.totalorder %s15, 1
    %p226 = por %p224, %p225
    %p227 = scmp.ne.s32.totalorder %s219, %s222
    %p228 = scmp.eq.s32.totalorder %s15, 0
    %p229 = por %p227, %p228
    %p230 = scmp.ne.s32.totalorder %s219, %s222
    %p231 = scmp.eq.s32.totalorder %s20, 1
    %p232 = por %p230, %p231
    %p233 = scmp.ne.s32.totalorder %s222, %s223
    %p234 = scmp.eq.s32.totalorder %s20, 0
    %p235 = por %p233, %p234
    %p236 = scmp.ne.s32.totalorder %s222, %s223
    %p237 = scmp.eq.s32.totalorder %s21, 1
    %p238 = por %p236, %p237
    %p240 = scmp.ne.s32.totalorder %s223, %s239
    %p241 = scmp.eq.s32.totalorder %s21, 0
    %p242 = por %p240, %p241
    %p243 = scmp.le.s32.totalorder 1, %s15
    %p244 = scmp.lt.s32.totalorder %s15, 3
    %p245 = pnand %p243, %p244
    %p246 = pneg %p245
    // Predicated region
    $region9: #{multiwindow_ms_g3d.1} parent=5 // pred_check
      _
    $region10: #{multiwindow_ms_g3d.1} parent=5 // pred_check_branch
      %248 = sbr.rel (%p245) target = $region12
    $region11: #{multiwindow_ms_g3d.1} parent=5 // pred_region
      %s249 = ssub.s32 %s15, 1
      // Predicated region
      $region13: #{multiwindow_ms_g3d.1} parent=11 // pred_check
        %p250 = pneg %p62
      $region14: #{multiwindow_ms_g3d.1} parent=11 // pred_check_branch
        %252 = sbr.rel (%p250) target = $region16
      $region15: #{multiwindow_ms_g3d.1} parent=11 // pred_region
        _
      $region16: #{multiwindow_ms_g3d.1} parent=11 // pred_fallthru
        _
      // Predicated region
      $region17: #{multiwindow_ms_g3d.1} parent=11 // pred_check
        %p253 = pneg %p83
      $region18: #{multiwindow_ms_g3d.1} parent=11 // pred_check_branch
        %255 = sbr.rel (%p253) target = $region20
      $region19: #{multiwindow_ms_g3d.1} parent=11 // pred_region
        _
      $region20: #{multiwindow_ms_g3d.1} parent=11 // pred_fallthru
        _
      // Predicated region
      $region21: #{multiwindow_ms_g3d.1} parent=11 // pred_check
        %p256 = pneg %p104
      $region22: #{multiwindow_ms_g3d.1} parent=11 // pred_check_branch
        %258 = sbr.rel (%p256) target = $region24
      $region23: #{multiwindow_ms_g3d.1} parent=11 // pred_region
        _
      $region24: #{multiwindow_ms_g3d.1} parent=11 // pred_fallthru
        _
      // Predicated region
      $region25: #{multiwindow_ms_g3d.1} parent=11 // pred_check
        %p259 = pneg %p125
      $region26: #{multiwindow_ms_g3d.1} parent=11 // pred_check_branch
        %261 = sbr.rel (%p259) target = $region28
      $region27: #{multiwindow_ms_g3d.1} parent=11 // pred_region
        _
      $region28: #{multiwindow_ms_g3d.1} parent=11 // pred_fallthru
        _
      // Predicated region
      $region29: #{multiwindow_ms_g3d.1} parent=11 // pred_check
        %p262 = pneg %p146
      $region30: #{multiwindow_ms_g3d.1} parent=11 // pred_check_branch
        %264 = sbr.rel (%p262) target = $region32
      $region31: #{multiwindow_ms_g3d.1} parent=11 // pred_region
        _
      $region32: #{multiwindow_ms_g3d.1} parent=11 // pred_fallthru
        _
      // Predicated region
      $region33: #{multiwindow_ms_g3d.1} parent=11 // pred_check
        %p265 = pneg %p167
      $region34: #{multiwindow_ms_g3d.1} parent=11 // pred_check_branch
        %267 = sbr.rel (%p265) target = $region36
      $region35: #{multiwindow_ms_g3d.1} parent=11 // pred_region
        _
      $region36: #{multiwindow_ms_g3d.1} parent=11 // pred_fallthru
        _
      // Predicated region
      $region37: #{multiwindow_ms_g3d.1} parent=11 // pred_check
        %p268 = pneg %p188
      $region38: #{multiwindow_ms_g3d.1} parent=11 // pred_check_branch
        %270 = sbr.rel (%p268) target = $region40
      $region39: #{multiwindow_ms_g3d.1} parent=11 // pred_region
        _
      $region40: #{multiwindow_ms_g3d.1} parent=11 // pred_fallthru
        _
      // Predicated region
      $region41: #{multiwindow_ms_g3d.1} parent=11 // pred_check
        %p271 = pneg %p209
      $region42: #{multiwindow_ms_g3d.1} parent=11 // pred_check_branch
        %273 = sbr.rel (%p271) target = $region44
      $region43: #{multiwindow_ms_g3d.1} parent=11 // pred_region
        _
      $region44: #{multiwindow_ms_g3d.1} parent=11 // pred_fallthru
        _
    $region12: #{multiwindow_ms_g3d.1} parent=5 // pred_fallthru
      _
    %p274 = scmp.lt.s32.totalorder %s15, 2
    // Predicated region
    $region45: #{multiwindow_ms_g3d.1} parent=5 // pred_check
      %p275 = pneg %p274
    $region46: #{multiwindow_ms_g3d.1} parent=5 // pred_check_branch
      %277 = sbr.rel (%p275) target = $region48
    $region47: #{multiwindow_ms_g3d.1} parent=5 // pred_region
      // Predicated region
      $region49: #{multiwindow_ms_g3d.1} parent=47 // pred_check
        %p278 = pneg %p35
      $region50: #{multiwindow_ms_g3d.1} parent=47 // pred_check_branch
        %280 = sbr.rel (%p278) target = $region52
      $region51: #{multiwindow_ms_g3d.1} parent=47 // pred_region
        %p281 = scmp.lt.s32.totalorder %s15, 1
        %s282 = scalar_select %p281, %s15, 1
        %s283 = smul.addr %s282, 10
        %s284 = smul.addr %s283, 4
        %s285 = scalar_lea.vmem %s0, %s284
      $region52: #{multiwindow_ms_g3d.1} parent=47 // pred_fallthru
        _
    $region48: #{multiwindow_ms_g3d.1} parent=5 // pred_fallthru
      _
    %p286 = scmp.le.s32.totalorder 1, %s15
    %p287 = scmp.lt.s32.totalorder %s15, 3
    %p288 = pnand %p286, %p287
    %p289 = pneg %p288
    // Predicated region
    $region53: #{multiwindow_ms_g3d.1} parent=5 // pred_check
      _
    $region54: #{multiwindow_ms_g3d.1} parent=5 // pred_check_branch
      %291 = sbr.rel (%p288) target = $region56
    $region55: #{multiwindow_ms_g3d.1} parent=5 // pred_region
      %s292 = ssub.s32 %s15, 1
      %p293 = scmp.lt.s32.totalorder %s20, 1
      %s294 = scalar_select %p293, %s20, 1
      %s295 = smul.addr %s294, 10
      %s296 = smul.addr %s295, 4
      %s297 = scalar_lea.vmem %s0, %s296
      %p298 = pneg %p41
      %p299 = pneg %p38
      %p300 = pneg %p62
      %p301 = pneg %p59
      %p302 = pneg %p83
      %p303 = pneg %p80
      %p304 = pneg %p104
      %p305 = pneg %p101
      %p306 = pneg %p125
      %p307 = pneg %p122
      %p308 = pneg %p146
      %p309 = pneg %p143
      %p310 = pneg %p167
      %p311 = pneg %p164
      %p312 = pneg %p188
      %p313 = pneg %p185
      %p314 = pneg %p209
      %p315 = pneg %p206
      %p316 = pneg %p235
      %p317 = pneg %p232
      %p318 = scmp.lt.s32.totalorder %s20, 1
      %s319 = scalar_select %p318, %s20, 1
      %s320 = smul.addr %s319, 2
      %s321 = smul.addr %s320, 8
      %s322 = scalar_lea.vmem %s9, %s321
      %p323 = scmp.lt.s32.totalorder %s20, 1
      %s324 = scalar_select %p323, %s20, 1
      %s325 = smul.addr %s324, 10
      %s326 = smul.addr %s325, 4
      %s327 = scalar_lea.vmem %s0, %s326
      %p328 = scmp.lt.s32.totalorder %s20, 1
      %s329 = scalar_select %p328, %s20, 1
      %s330 = smul.addr %s329, 2
      %s331 = smul.addr %s330, 8
      %s332 = scalar_lea.vmem %s9, %s331
      %v334 = vld [vmem:[%s327] sm:$0xf]
      %v335 = vld [vmem:[%s327 + $0x4] sm:$0xf]
      %v336 = vld [vmem:[%s327 + $0x8] sm:$0xf]
      %v337 = vld [vmem:[%s327 + $0xc] sm:$0xf]
      %v338 = vld [vmem:[%s327 + $0x10] sm:$0xf]
      %v339 = vld [vmem:[%s327 + $0x14] sm:$0xf]
      %v340 = vld [vmem:[%s327 + $0x18] sm:$0xf]
      %v341 = vld [vmem:[%s327 + $0x1c] sm:$0xf]
      %v342 = vld [vmem:[%s327 + $0x20] sm:$0xf]
      %v343 = vld [vmem:[%s327 + $0x24] sm:$0xf]
      %v344 = vld [vmem:[%s3] sm:$0xf]
      %v345 = vld [vmem:[%s3 + $0x4] sm:$0xf]
      %v346 = vld [vmem:[%s3 + $0x8] sm:$0xf]
      %v347 = vld [vmem:[%s3 + $0xc] sm:$0xf]
      %v354 = vunpack.c.l.b16 %v336
      %v355 = vunpack.c.l.b16 %v337
      %v356 = vunpack.c.l.b16 %v338
      %v357 = vunpack.c.l.b16 %v339
      %v358 = vunpack.c.l.b16 %v340
      %v359 = vunpack.c.l.b16 %v341
      %v360 = vpack.c.b16 %v355, %v354
      %v361 = vpack.c.b16 %v357, %v356
      %v362 = vpack.c.b16 %v359, %v358
      %v367 = vunpack.c.l.b16 %v344
      %v368 = vunpack.c.l.b16 %v345
      %v369 = vunpack.c.l.b16 %v346
      %v370 = vunpack.c.l.b16 %v347
      %v371 = vpack.c.b16 %v368, %v367
      %v372 = vpack.c.b16 %v370, %v369
      %vm375 = vcmask 261120
      %v377 = vsel %vm375, %v360, 0
      %v380 = vsel %vm375, %v361, 0
      %v383 = vsel %vm375, %v362, 0
      %385 = vmatprep.subr.bf16.mxu0 0
      %386 = vmatpush1.bf16.msra.mxu0 %v371
      %387 = vmatprep.subr.bf16.mxu0 0
      %388 = vmatpush1.bf16.msra.mxu0 %v372
      %389 = vmatprep.subr.bf16.mxu0 0
      %390 = vmatpush1.bf16.msra.mxu0 0
      %391 = vmatprep.subr.bf16.mxu0 0
      %392 = vmatpush1.bf16.msra.mxu0 0
      %393 = vmatprep.subr.bf16.mxu0 0
      %394 = vmatpush1.bf16.msra.mxu0 0
      %395 = vmatprep.subr.bf16.mxu0 0
      %396 = vmatpush1.bf16.msra.mxu0 0
      %397 = vmatprep.subr.bf16.mxu0 0
      %398 = vmatpush1.bf16.msra.mxu0 0
      %399 = vmatprep.subr.bf16.mxu0 0
      %400 = vmatpush1.bf16.msra.mxu0 0
      %401 = vmatprep.subr.bf16.mxu0 0
      %402 = vmatpush1.bf16.msra.mxu0 0
      %403 = vmatprep.subr.bf16.mxu0 0
      %404 = vmatpush1.bf16.msra.mxu0 0
      %405 = vmatprep.subr.bf16.mxu0 0
      %406 = vmatpush1.bf16.msra.mxu0 0
      %407 = vmatprep.subr.bf16.mxu0 0
      %408 = vmatpush1.bf16.msra.mxu0 0
      %409 = vmatprep.subr.bf16.mxu0 0
      %410 = vmatpush1.bf16.msra.mxu0 0
      %411 = vmatprep.subr.bf16.mxu0 0
      %412 = vmatpush1.bf16.msra.mxu0 0
      %413 = vmatprep.subr.bf16.mxu0 0
      %414 = vmatpush1.bf16.msra.mxu0 0
      %415 = vmatprep.subr.bf16.mxu0 0
      %416 = vmatpush1.bf16.msra.mxu0 0
      %417 = vmatprep.mubr.bf16.mxu0 0
      %418 = vmatmul.mubr.bf16.gmra.mrb[0].mxu0 %v377
      %v419 = vpop.f32.mrb[0].mxu0
      %v420 = vadd.f32 0.0, %v419
      %v421 = vpop.f32.mrb[0].mxu0
      %v422 = vpop.f32.mrb[0].mxu0
      %v423 = vadd.f32 0.0, %v422
      %v424 = vpop.f32.mrb[0].mxu0
      %425 = vmatprep.mubr.bf16.mxu0 0
      %426 = vmatmul.mubr.bf16.gmra.mrb[0].mxu0 %v380
      %v427 = vpop.f32.mrb[0].mxu0
      %v428 = vadd.f32 0.0, %v427
      %v429 = vpop.f32.mrb[0].mxu0
      %v430 = vpop.f32.mrb[0].mxu0
      %v431 = vadd.f32 0.0, %v430
      %v432 = vpop.f32.mrb[0].mxu0
      %433 = vmatprep.mubr.bf16.mxu0 0
      %434 = vmatmul.mubr.bf16.gmra.mrb[0].mxu0 %v383
      %v435 = vpop.f32.mrb[0].mxu0
      %v436 = vadd.f32 0.0, %v435
      %v437 = vpop.f32.mrb[0].mxu0
      %v438 = vpop.f32.mrb[0].mxu0
      %v439 = vadd.f32 0.0, %v438
      %v440 = vpop.f32.mrb[0].mxu0
      %441 = vdwg.mxu0
      %v442 = vpack.c.bf16 %v423, %v420
      %v443 = vpack.c.bf16 %v431, %v428
      %v444 = vpack.c.bf16 %v439, %v436
      %445 = vst.msk [vmem:[#allocation2] sm:$0xff] %vm375, %v442
      %446 = vst.msk [vmem:[#allocation2 + $0x8] sm:$0xff] %vm375, %v443
      %447 = vst.msk [vmem:[#allocation2 + $0x10] sm:$0xff] %vm375, %v444
      %s448 = scalar_lea.vmem %s3, 16
      %v449 = vld [vmem:[%s448] sm:$0xf]
      %v450 = vld [vmem:[%s448 + $0x4] sm:$0xf]
      %v451 = vld [vmem:[%s448 + $0x8] sm:$0xf]
      %v452 = vld [vmem:[%s448 + $0xc] sm:$0xf]
      %v457 = vunpack.c.l.b16 %v449
      %v458 = vunpack.c.l.b16 %v450
      %v459 = vunpack.c.l.b16 %v451
      %v460 = vunpack.c.l.b16 %v452
      %v461 = vpack.c.b16 %v458, %v457
      %v462 = vpack.c.b16 %v460, %v459
      %465 = vmatprep.subr.bf16.mxu0 0
      %466 = vmatpush1.bf16.msra.mxu0 %v461
      %467 = vmatprep.subr.bf16.mxu0 0
      %468 = vmatpush1.bf16.msra.mxu0 %v462
      %469 = vmatprep.subr.bf16.mxu0 0
      %470 = vmatpush1.bf16.msra.mxu0 0
      %471 = vmatprep.subr.bf16.mxu0 0
      %472 = vmatpush1.bf16.msra.mxu0 0
      %473 = vmatprep.subr.bf16.mxu0 0
      %474 = vmatpush1.bf16.msra.mxu0 0
      %475 = vmatprep.subr.bf16.mxu0 0
      %476 = vmatpush1.bf16.msra.mxu0 0
      %477 = vmatprep.subr.bf16.mxu0 0
      %478 = vmatpush1.bf16.msra.mxu0 0
      %479 = vmatprep.subr.bf16.mxu0 0
      %480 = vmatpush1.bf16.msra.mxu0 0
      %481 = vmatprep.subr.bf16.mxu0 0
      %482 = vmatpush1.bf16.msra.mxu0 0
      %483 = vmatprep.subr.bf16.mxu0 0
      %484 = vmatpush1.bf16.msra.mxu0 0
      %485 = vmatprep.subr.bf16.mxu0 0
      %486 = vmatpush1.bf16.msra.mxu0 0
      %487 = vmatprep.subr.bf16.mxu0 0
      %488 = vmatpush1.bf16.msra.mxu0 0
      %489 = vmatprep.subr.bf16.mxu0 0
      %490 = vmatpush1.bf16.msra.mxu0 0
      %491 = vmatprep.subr.bf16.mxu0 0
      %492 = vmatpush1.bf16.msra.mxu0 0
      %493 = vmatprep.subr.bf16.mxu0 0
      %494 = vmatpush1.bf16.msra.mxu0 0
      %495 = vmatprep.subr.bf16.mxu0 0
      %496 = vmatpush1.bf16.msra.mxu0 0
      %497 = vmatprep.mubr.bf16.mxu0 0
      %498 = vmatmul.mubr.bf16.gmra.mrb[0].mxu0 %v377
      %v499 = vpop.f32.mrb[0].mxu0
      %v500 = vadd.f32 0.0, %v499
      %v501 = vpop.f32.mrb[0].mxu0
      %v502 = vpop.f32.mrb[0].mxu0
      %v503 = vadd.f32 0.0, %v502
      %v504 = vpop.f32.mrb[0].mxu0
      %505 = vmatprep.mubr.bf16.mxu0 0
      %506 = vmatmul.mubr.bf16.gmra.mrb[0].mxu0 %v380
      %v507 = vpop.f32.mrb[0].mxu0
      %v508 = vadd.f32 0.0, %v507
      %v509 = vpop.f32.mrb[0].mxu0
      %v510 = vpop.f32.mrb[0].mxu0
      %v511 = vadd.f32 0.0, %v510
      %v512 = vpop.f32.mrb[0].mxu0
      %513 = vmatprep.mubr.bf16.mxu0 0
      %514 = vmatmul.mubr.bf16.gmra.mrb[0].mxu0 %v383
      %v515 = vpop.f32.mrb[0].mxu0
      %v516 = vadd.f32 0.0, %v515
      %v517 = vpop.f32.mrb[0].mxu0
      %v518 = vpop.f32.mrb[0].mxu0
      %v519 = vadd.f32 0.0, %v518
      %v520 = vpop.f32.mrb[0].mxu0
      %521 = vdwg.mxu0
      %v522 = vpack.c.bf16 %v503, %v500
      %v523 = vpack.c.bf16 %v511, %v508
      %v524 = vpack.c.bf16 %v519, %v516
      %525 = vst.msk [vmem:[#allocation2 + $0x18] sm:$0xff] %vm375, %v522
      %526 = vst.msk [vmem:[#allocation2 + $0x20] sm:$0xff] %vm375, %v523
      %527 = vst.msk [vmem:[#allocation2 + $0x28] sm:$0xff] %vm375, %v524
      %s528 = scalar_lea.vmem %s3, 32
      %v529 = vld [vmem:[%s528] sm:$0xf]
      %v530 = vld [vmem:[%s528 + $0x4] sm:$0xf]
      %v531 = vld [vmem:[%s528 + $0x8] sm:$0xf]
      %v532 = vld [vmem:[%s528 + $0xc] sm:$0xf]
      %v537 = vunpack.c.l.b16 %v529
      %v538 = vunpack.c.l.b16 %v530
      %v539 = vunpack.c.l.b16 %v531
      %v540 = vunpack.c.l.b16 %v532
      %v541 = vpack.c.b16 %v538, %v537
      %v542 = vpack.c.b16 %v540, %v539
      %545 = vmatprep.subr.bf16.mxu0 0
      %546 = vmatpush1.bf16.msra.mxu0 %v541
      %547 = vmatprep.subr.bf16.mxu0 0
      %548 = vmatpush1.bf16.msra.mxu0 %v542
      %549 = vmatprep.subr.bf16.mxu0 0
      %550 = vmatpush1.bf16.msra.mxu0 0
      %551 = vmatprep.subr.bf16.mxu0 0
      %552 = vmatpush1.bf16.msra.mxu0 0
      %553 = vmatprep.subr.bf16.mxu0 0
      %554 = vmatpush1.bf16.msra.mxu0 0
      %555 = vmatprep.subr.bf16.mxu0 0
      %556 = vmatpush1.bf16.msra.mxu0 0
      %557 = vmatprep.subr.bf16.mxu0 0
      %558 = vmatpush1.bf16.msra.mxu0 0
      %559 = vmatprep.subr.bf16.mxu0 0
      %560 = vmatpush1.bf16.msra.mxu0 0
      %561 = vmatprep.subr.bf16.mxu0 0
      %562 = vmatpush1.bf16.msra.mxu0 0
      %563 = vmatprep.subr.bf16.mxu0 0
      %564 = vmatpush1.bf16.msra.mxu0 0
      %565 = vmatprep.subr.bf16.mxu0 0
      %566 = vmatpush1.bf16.msra.mxu0 0
      %567 = vmatprep.subr.bf16.mxu0 0
      %568 = vmatpush1.bf16.msra.mxu0 0
      %569 = vmatprep.subr.bf16.mxu0 0
      %570 = vmatpush1.bf16.msra.mxu0 0
      %571 = vmatprep.subr.bf16.mxu0 0
      %572 = vmatpush1.bf16.msra.mxu0 0
      %573 = vmatprep.subr.bf16.mxu0 0
      %574 = vmatpush1.bf16.msra.mxu0 0
      %575 = vmatprep.subr.bf16.mxu0 0
      %576 = vmatpush1.bf16.msra.mxu0 0
      %577 = vmatprep.mubr.bf16.mxu0 0
      %578 = vmatmul.mubr.bf16.gmra.mrb[0].mxu0 %v377
      %v579 = vpop.f32.mrb[0].mxu0
      %v580 = vadd.f32 0.0, %v579
      %v581 = vpop.f32.mrb[0].mxu0
      %v582 = vpop.f32.mrb[0].mxu0
      %v583 = vadd.f32 0.0, %v582
      %v584 = vpop.f32.mrb[0].mxu0
      %585 = vmatprep.mubr.bf16.mxu0 0
      %586 = vmatmul.mubr.bf16.gmra.mrb[0].mxu0 %v380
      %v587 = vpop.f32.mrb[0].mxu0
      %v588 = vadd.f32 0.0, %v587
      %v589 = vpop.f32.mrb[0].mxu0
      %v590 = vpop.f32.mrb[0].mxu0
      %v591 = vadd.f32 0.0, %v590
      %v592 = vpop.f32.mrb[0].mxu0
      %593 = vmatprep.mubr.bf16.mxu0 0
      %594 = vmatmul.mubr.bf16.gmra.mrb[0].mxu0 %v383
      %v595 = vpop.f32.mrb[0].mxu0
      %v596 = vadd.f32 0.0, %v595
      %v597 = vpop.f32.mrb[0].mxu0
      %v598 = vpop.f32.mrb[0].mxu0
      %v599 = vadd.f32 0.0, %v598
      %v600 = vpop.f32.mrb[0].mxu0
      %601 = vdwg.mxu0
      %v602 = vpack.c.bf16 %v583, %v580
      %v603 = vpack.c.bf16 %v591, %v588
      %v604 = vpack.c.bf16 %v599, %v596
      %605 = vst.msk [vmem:[#allocation2 + $0x30] sm:$0xff] %vm375, %v602
      %606 = vst.msk [vmem:[#allocation2 + $0x38] sm:$0xff] %vm375, %v603
      %607 = vst.msk [vmem:[#allocation2 + $0x40] sm:$0xff] %vm375, %v604
      %v608 = vld [vmem:[%s1] sm:$0xff]
      %v609 = vld [vmem:[%s1 + $0x8] sm:$0xff]
      %v610 = vld [vmem:[%s1 + $0x10] sm:$0xff]
      %v611 = vld [vmem:[%s1 + $0x18] sm:$0xff]
      %v612 = vld [vmem:[%s1 + $0x20] sm:$0xff]
      %v613 = vld [vmem:[%s1 + $0x28] sm:$0xff]
      %v614 = vld [vmem:[#allocation2] sm:$0xff]
      %v615 = vld [vmem:[#allocation2 + $0x8] sm:$0xff]
      %v616 = vld [vmem:[#allocation2 + $0x10] sm:$0xff]
      %v617 = vld [vmem:[#allocation2 + $0x18] sm:$0xff]
      %v618 = vld [vmem:[#allocation2 + $0x20] sm:$0xff]
      %v619 = vld [vmem:[#allocation2 + $0x28] sm:$0xff]
      %v620 = vld [vmem:[#allocation2 + $0x30] sm:$0xff]
      %v621 = vld [vmem:[#allocation2 + $0x38] sm:$0xff]
      %v622 = vld [vmem:[#allocation2 + $0x40] sm:$0xff]
      %v623 = vld [vmem:[%s5] sm:$0x1]
      %v625 = vlaneseq
      %v626 = vshrl.u32 %v625, 7
      %v627 = vsub.s32 0, %v626
      %v628 = vrot.slane %v623, %v627
      %v636 = vunpack.c.l.b16 %v608
      %v637 = vunpack.c.h.b16 %v608
      %v638 = vunpack.c.l.b16 %v609
      %v639 = vunpack.c.h.b16 %v609
      %v640 = vunpack.c.l.b16 %v610
      %v641 = vunpack.c.h.b16 %v610
      %v642 = vunpack.c.l.b16 %v611
      %v643 = vunpack.c.h.b16 %v611
      %v644 = vunpack.c.l.b16 %v612
      %v645 = vunpack.c.h.b16 %v612
      %v646 = vunpack.c.l.b16 %v613
      %v647 = vunpack.c.h.b16 %v613
      %v648 = vpack.c.b16 %v638, %v636
      %v649 = vpack.c.b16 %v639, %v637
      %v650 = vpack.c.b16 %v642, %v640
      %v651 = vpack.c.b16 %v643, %v641
      %v652 = vpack.c.b16 %v646, %v644
      %v653 = vpack.c.b16 %v647, %v645
      %vm657 = vcmask 130048
      %v659 = vsel %vm657, %v649, 0
      %v662 = vsel %vm657, %v651, 0
      %v665 = vsel %vm657, %v653, 0
      %667 = vmatprep.subr.bf16.mxu0 0
      %668 = vmatpush1.bf16.msra.mxu0 %v614
      %669 = vmatprep.subr.bf16.mxu0 0
      %670 = vmatpush1.bf16.msra.mxu0 %v615
      %671 = vmatprep.subr.bf16.mxu0 0
      %672 = vmatpush1.bf16.msra.mxu0 %v616
      %673 = vmatprep.subr.bf16.mxu0 0
      %674 = vmatpush1.bf16.msra.mxu0 %v617
      %675 = vmatprep.subr.bf16.mxu0 0
      %676 = vmatpush1.bf16.msra.mxu0 %v618
      %677 = vmatprep.subr.bf16.mxu0 0
      %678 = vmatpush1.bf16.msra.mxu0 %v619
      %679 = vmatprep.subr.bf16.mxu0 0
      %680 = vmatpush1.bf16.msra.mxu0 %v620
      %681 = vmatprep.subr.bf16.mxu0 0
      %682 = vmatpush1.bf16.msra.mxu0 %v621
      %683 = vmatprep.subr.bf16.mxu0 0
      %684 = vmatpush1.bf16.msra.mxu0 %v622
      %685 = vmatprep.subr.bf16.mxu0 0
      %686 = vmatpush1.bf16.msra.mxu0 0
      %687 = vmatprep.subr.bf16.mxu0 0
      %688 = vmatpush1.bf16.msra.mxu0 0
      %689 = vmatprep.subr.bf16.mxu0 0
      %690 = vmatpush1.bf16.msra.mxu0 0
      %691 = vmatprep.subr.bf16.mxu0 0
      %692 = vmatpush1.bf16.msra.mxu0 0
      %693 = vmatprep.subr.bf16.mxu0 0
      %694 = vmatpush1.bf16.msra.mxu0 0
      %695 = vmatprep.subr.bf16.mxu0 0
      %696 = vmatpush1.bf16.msra.mxu0 0
      %697 = vmatprep.subr.bf16.mxu0 0
      %698 = vmatpush1.bf16.msra.mxu0 0
      %699 = vmatprep.mubr.bf16.mxu0 %v659
      %700 = vmatmul.mubr.bf16.gmra.mrb[0].mxu0 %v648
      %v701 = vpop.f32.mrb[0].mxu0
      %v702 = vadd.f32 %v628, %v701
      %v703 = vpop.f32.mrb[0].mxu0
      %v704 = vpop.f32.mrb[0].mxu0
      %v705 = vadd.f32 %v628, %v704
      %v706 = vpop.f32.mrb[0].mxu0
      %707 = vmatprep.mubr.bf16.mxu0 %v662
      %708 = vmatmul.mubr.bf16.gmra.mrb[0].mxu0 %v650
      %v709 = vpop.f32.mrb[0].mxu0
      %v710 = vadd.f32 %v628, %v709
      %v711 = vpop.f32.mrb[0].mxu0
      %v712 = vpop.f32.mrb[0].mxu0
      %v713 = vadd.f32 %v628, %v712
      %v714 = vpop.f32.mrb[0].mxu0
      %715 = vmatprep.mubr.bf16.mxu0 %v665
      %716 = vmatmul.mubr.bf16.gmra.mrb[0].mxu0 %v652
      %v717 = vpop.f32.mrb[0].mxu0
      %v718 = vadd.f32 %v628, %v717
      %v719 = vpop.f32.mrb[0].mxu0
      %v720 = vpop.f32.mrb[0].mxu0
      %v721 = vadd.f32 %v628, %v720
      %v722 = vpop.f32.mrb[0].mxu0
      %723 = vdwg.mxu0
      %v724 = vmax.f32 %v702, 0.0
      %v725 = vmax.f32 %v705, 0.0
      %v726 = vmax.f32 %v710, 0.0
      %v727 = vmax.f32 %v713, 0.0
      %v728 = vmax.f32 %v718, 0.0
      %v729 = vmax.f32 %v721, 0.0
      %v730 = vpack.c.bf16 %v725, %v724
      %v731 = vpack.c.bf16 %v727, %v726
      %v732 = vpack.c.bf16 %v729, %v728
      %v733 = vld [vmem:[%s6] sm:$0xf]
      %v734 = vld [vmem:[%s6 + $0x4] sm:$0xf]
      %v735 = vld [vmem:[%s6 + $0x8] sm:$0xf]
      %v736 = vld [vmem:[%s6 + $0xc] sm:$0xf]
      %s737 = scalar_lea.vmem %s6, 16
      %v738 = vld [vmem:[%s737] sm:$0xf]
      %v739 = vld [vmem:[%s737 + $0x4] sm:$0xf]
      %v740 = vld [vmem:[%s737 + $0x8] sm:$0xf]
      %v741 = vld [vmem:[%s737 + $0xc] sm:$0xf]
      %v746 = vunpack.c.l.b16 %v738
      %v747 = vunpack.c.l.b16 %v739
      %v748 = vunpack.c.l.b16 %v740
      %v749 = vunpack.c.l.b16 %v741
      %v750 = vpack.c.b16 %v747, %v746
      %v751 = vpack.c.b16 %v749, %v748
      %v755 = vsel %vm375, %v731, 0
      %757 = vmatprep.subr.bf16.mxu0 0
      %758 = vmatpush1.bf16.msra.mxu0 %v750
      %759 = vmatprep.subr.bf16.mxu0 0
      %760 = vmatpush1.bf16.msra.mxu0 %v751
      %761 = vmatprep.subr.bf16.mxu0 0
      %762 = vmatpush1.bf16.msra.mxu0 0
      %763 = vmatprep.subr.bf16.mxu0 0
      %764 = vmatpush1.bf16.msra.mxu0 0
      %765 = vmatprep.subr.bf16.mxu0 0
      %766 = vmatpush1.bf16.msra.mxu0 0
      %767 = vmatprep.subr.bf16.mxu0 0
      %768 = vmatpush1.bf16.msra.mxu0 0
      %769 = vmatprep.subr.bf16.mxu0 0
      %770 = vmatpush1.bf16.msra.mxu0 0
      %771 = vmatprep.subr.bf16.mxu0 0
      %772 = vmatpush1.bf16.msra.mxu0 0
      %773 = vmatprep.subr.bf16.mxu0 0
      %774 = vmatpush1.bf16.msra.mxu0 0
      %775 = vmatprep.subr.bf16.mxu0 0
      %776 = vmatpush1.bf16.msra.mxu0 0
      %777 = vmatprep.subr.bf16.mxu0 0
      %778 = vmatpush1.bf16.msra.mxu0 0
      %779 = vmatprep.subr.bf16.mxu0 0
      %780 = vmatpush1.bf16.msra.mxu0 0
      %781 = vmatprep.subr.bf16.mxu0 0
      %782 = vmatpush1.bf16.msra.mxu0 0
      %783 = vmatprep.subr.bf16.mxu0 0
      %784 = vmatpush1.bf16.msra.mxu0 0
      %785 = vmatprep.subr.bf16.mxu0 0
      %786 = vmatpush1.bf16.msra.mxu0 0
      %787 = vmatprep.subr.bf16.mxu0 0
      %788 = vmatpush1.bf16.msra.mxu0 0
      %789 = vmatprep.mubr.bf16.mxu0 0
      %790 = vmatmul.mubr.bf16.gmra.mrb[0].mxu0 %v755
      %v791 = vpop.f32.mrb[0].mxu0
      %v792 = vadd.f32 0.0, %v791
      %v793 = vpop.f32.mrb[0].mxu0
      %v794 = vpop.f32.mrb[0].mxu0
      %v795 = vadd.f32 0.0, %v794
      %v796 = vpop.f32.mrb[0].mxu0
      %797 = vdwg.mxu0
      %v802 = vunpack.c.l.b16 %v733
      %v803 = vunpack.c.l.b16 %v734
      %v804 = vunpack.c.l.b16 %v735
      %v805 = vunpack.c.l.b16 %v736
      %v806 = vpack.c.b16 %v803, %v802
      %v807 = vpack.c.b16 %v805, %v804
      %v811 = vsel %vm375, %v730, 0
      %813 = vmatprep.subr.bf16.mxu0 0
      %814 = vmatpush1.bf16.msra.mxu0 %v806
      %815 = vmatprep.subr.bf16.mxu0 0
      %816 = vmatpush1.bf16.msra.mxu0 %v807
      %817 = vmatprep.subr.bf16.mxu0 0
      %818 = vmatpush1.bf16.msra.mxu0 0
      %819 = vmatprep.subr.bf16.mxu0 0
      %820 = vmatpush1.bf16.msra.mxu0 0
      %821 = vmatprep.subr.bf16.mxu0 0
      %822 = vmatpush1.bf16.msra.mxu0 0
      %823 = vmatprep.subr.bf16.mxu0 0
      %824 = vmatpush1.bf16.msra.mxu0 0
      %825 = vmatprep.subr.bf16.mxu0 0
      %826 = vmatpush1.bf16.msra.mxu0 0
      %827 = vmatprep.subr.bf16.mxu0 0
      %828 = vmatpush1.bf16.msra.mxu0 0
      %829 = vmatprep.subr.bf16.mxu0 0
      %830 = vmatpush1.bf16.msra.mxu0 0
      %831 = vmatprep.subr.bf16.mxu0 0
      %832 = vmatpush1.bf16.msra.mxu0 0
      %833 = vmatprep.subr.bf16.mxu0 0
      %834 = vmatpush1.bf16.msra.mxu0 0
      %835 = vmatprep.subr.bf16.mxu0 0
      %836 = vmatpush1.bf16.msra.mxu0 0
      %837 = vmatprep.subr.bf16.mxu0 0
      %838 = vmatpush1.bf16.msra.mxu0 0
      %839 = vmatprep.subr.bf16.mxu0 0
      %840 = vmatpush1.bf16.msra.mxu0 0
      %841 = vmatprep.subr.bf16.mxu0 0
      %842 = vmatpush1.bf16.msra.mxu0 0
      %843 = vmatprep.subr.bf16.mxu0 0
      %844 = vmatpush1.bf16.msra.mxu0 0
      %845 = vmatprep.mubr.bf16.mxu0 0
      %846 = vmatmul.mubr.bf16.gmra.mrb[0].mxu0 %v811
      %v847 = vpop.f32.mrb[0].mxu0
      %v848 = vadd.f32 %v792, %v847
      %v849 = vpop.f32.mrb[0].mxu0
      %v850 = vpop.f32.mrb[0].mxu0
      %v851 = vadd.f32 %v795, %v850
      %v852 = vpop.f32.mrb[0].mxu0
      %853 = vdwg.mxu0
      %s854 = scalar_lea.vmem %s6, 32
      %v855 = vld [vmem:[%s854] sm:$0xf]
      %v856 = vld [vmem:[%s854 + $0x4] sm:$0xf]
      %v857 = vld [vmem:[%s854 + $0x8] sm:$0xf]
      %v858 = vld [vmem:[%s854 + $0xc] sm:$0xf]
      %v863 = vunpack.c.l.b16 %v855
      %v864 = vunpack.c.l.b16 %v856
      %v865 = vunpack.c.l.b16 %v857
      %v866 = vunpack.c.l.b16 %v858
      %v867 = vpack.c.b16 %v864, %v863
      %v868 = vpack.c.b16 %v866, %v865
      %v872 = vsel %vm375, %v732, 0
      %874 = vmatprep.subr.bf16.mxu0 0
      %875 = vmatpush1.bf16.msra.mxu0 %v867
      %876 = vmatprep.subr.bf16.mxu0 0
      %877 = vmatpush1.bf16.msra.mxu0 %v868
      %878 = vmatprep.subr.bf16.mxu0 0
      %879 = vmatpush1.bf16.msra.mxu0 0
      %880 = vmatprep.subr.bf16.mxu0 0
      %881 = vmatpush1.bf16.msra.mxu0 0
      %882 = vmatprep.subr.bf16.mxu0 0
      %883 = vmatpush1.bf16.msra.mxu0 0
      %884 = vmatprep.subr.bf16.mxu0 0
      %885 = vmatpush1.bf16.msra.mxu0 0
      %886 = vmatprep.subr.bf16.mxu0 0
      %887 = vmatpush1.bf16.msra.mxu0 0
      %888 = vmatprep.subr.bf16.mxu0 0
      %889 = vmatpush1.bf16.msra.mxu0 0
      %890 = vmatprep.subr.bf16.mxu0 0
      %891 = vmatpush1.bf16.msra.mxu0 0
      %892 = vmatprep.subr.bf16.mxu0 0
      %893 = vmatpush1.bf16.msra.mxu0 0
      %894 = vmatprep.subr.bf16.mxu0 0
      %895 = vmatpush1.bf16.msra.mxu0 0
      %896 = vmatprep.subr.bf16.mxu0 0
      %897 = vmatpush1.bf16.msra.mxu0 0
      %898 = vmatprep.subr.bf16.mxu0 0
      %899 = vmatpush1.bf16.msra.mxu0 0
      %900 = vmatprep.subr.bf16.mxu0 0
      %901 = vmatpush1.bf16.msra.mxu0 0
      %902 = vmatprep.subr.bf16.mxu0 0
      %903 = vmatpush1.bf16.msra.mxu0 0
      %904 = vmatprep.subr.bf16.mxu0 0
      %905 = vmatpush1.bf16.msra.mxu0 0
      %906 = vmatprep.mubr.bf16.mxu0 0
      %907 = vmatmul.mubr.bf16.gmra.mrb[0].mxu0 %v872
      %v908 = vpop.f32.mrb[0].mxu0
      %v909 = vadd.f32 0.0, %v908
      %v910 = vpop.f32.mrb[0].mxu0
      %v911 = vpop.f32.mrb[0].mxu0
      %v912 = vadd.f32 0.0, %v911
      %v913 = vpop.f32.mrb[0].mxu0
      %914 = vdwg.mxu0
      %v915 = vadd.f32 %v848, %v909
      %v916 = vadd.f32 %v851, %v912
      %v917 = vld [vmem:[%s4] sm:$0xf]
      %v918 = vld [vmem:[%s4 + $0x4] sm:$0xf]
      %v919 = vld [vmem:[%s4 + $0x8] sm:$0xf]
      %v920 = vld [vmem:[%s4 + $0xc] sm:$0xf]
      %v925 = vunpack.c.l.b16 %v334
      %v926 = vunpack.c.l.b16 %v335
      %v927 = vunpack.c.l.b16 %v342
      %v928 = vunpack.c.l.b16 %v343
      %v929 = vpack.c.b16 %v926, %v925
      %v930 = vpack.c.b16 %v928, %v927
      %v935 = vunpack.c.l.b16 %v917
      %v936 = vunpack.c.l.b16 %v918
      %v937 = vunpack.c.l.b16 %v919
      %v938 = vunpack.c.l.b16 %v920
      %v939 = vpack.c.b16 %v936, %v935
      %v940 = vpack.c.b16 %v938, %v937
      %v944 = vsel %vm375, %v929, 0
      %v947 = vsel %vm375, %v930, 0
      %949 = vmatprep.subr.bf16.mxu0 0
      %950 = vmatpush1.bf16.msra.mxu0 %v939
      %951 = vmatprep.subr.bf16.mxu0 0
      %952 = vmatpush1.bf16.msra.mxu0 %v940
      %953 = vmatprep.subr.bf16.mxu0 0
      %954 = vmatpush1.bf16.msra.mxu0 0
      %955 = vmatprep.subr.bf16.mxu0 0
      %956 = vmatpush1.bf16.msra.mxu0 0
      %957 = vmatprep.subr.bf16.mxu0 0
      %958 = vmatpush1.bf16.msra.mxu0 0
      %959 = vmatprep.subr.bf16.mxu0 0
      %960 = vmatpush1.bf16.msra.mxu0 0
      %961 = vmatprep.subr.bf16.mxu0 0
      %962 = vmatpush1.bf16.msra.mxu0 0
      %963 = vmatprep.subr.bf16.mxu0 0
      %964 = vmatpush1.bf16.msra.mxu0 0
      %965 = vmatprep.subr.bf16.mxu0 0
      %966 = vmatpush1.bf16.msra.mxu0 0
      %967 = vmatprep.subr.bf16.mxu0 0
      %968 = vmatpush1.bf16.msra.mxu0 0
      %969 = vmatprep.subr.bf16.mxu0 0
      %970 = vmatpush1.bf16.msra.mxu0 0
      %971 = vmatprep.subr.bf16.mxu0 0
      %972 = vmatpush1.bf16.msra.mxu0 0
      %973 = vmatprep.subr.bf16.mxu0 0
      %974 = vmatpush1.bf16.msra.mxu0 0
      %975 = vmatprep.subr.bf16.mxu0 0
      %976 = vmatpush1.bf16.msra.mxu0 0
      %977 = vmatprep.subr.bf16.mxu0 0
      %978 = vmatpush1.bf16.msra.mxu0 0
      %979 = vmatprep.subr.bf16.mxu0 0
      %980 = vmatpush1.bf16.msra.mxu0 0
      %981 = vmatprep.mubr.bf16.mxu0 0
      %982 = vmatmul.mubr.bf16.gmra.mrb[0].mxu0 %v944
      %v983 = vpop.f32.mrb[0].mxu0
      %v984 = vadd.f32 0.0, %v983
      %v985 = vpop.f32.mrb[0].mxu0
      %v986 = vpop.f32.mrb[0].mxu0
      %v987 = vadd.f32 0.0, %v986
      %v988 = vpop.f32.mrb[0].mxu0
      %989 = vmatprep.mubr.bf16.mxu0 0
      %990 = vmatmul.mubr.bf16.gmra.mrb[0].mxu0 %v377
      %v991 = vpop.f32.mrb[0].mxu0
      %v992 = vadd.f32 0.0, %v991
      %v993 = vpop.f32.mrb[0].mxu0
      %v994 = vpop.f32.mrb[0].mxu0
      %v995 = vadd.f32 0.0, %v994
      %v996 = vpop.f32.mrb[0].mxu0
      %997 = vmatprep.mubr.bf16.mxu0 0
      %998 = vmatmul.mubr.bf16.gmra.mrb[0].mxu0 %v380
      %v999 = vpop.f32.mrb[0].mxu0
      %v1000 = vadd.f32 0.0, %v999
      %v1001 = vpop.f32.mrb[0].mxu0
      %v1002 = vpop.f32.mrb[0].mxu0
      %v1003 = vadd.f32 0.0, %v1002
      %v1004 = vpop.f32.mrb[0].mxu0
      %1005 = vmatprep.mubr.bf16.mxu0 0
      %1006 = vmatmul.mubr.bf16.gmra.mrb[0].mxu0 %v383
      %v1007 = vpop.f32.mrb[0].mxu0
      %v1008 = vadd.f32 0.0, %v1007
      %v1009 = vpop.f32.mrb[0].mxu0
      %v1010 = vpop.f32.mrb[0].mxu0
      %v1011 = vadd.f32 0.0, %v1010
      %v1012 = vpop.f32.mrb[0].mxu0
      %1013 = vmatprep.mubr.bf16.mxu0 0
      %1014 = vmatmul.mubr.bf16.gmra.mrb[0].mxu0 %v947
      %v1015 = vpop.f32.mrb[0].mxu0
      %v1016 = vadd.f32 0.0, %v1015
      %v1017 = vpop.f32.mrb[0].mxu0
      %v1018 = vpop.f32.mrb[0].mxu0
      %v1019 = vadd.f32 0.0, %v1018
      %v1020 = vpop.f32.mrb[0].mxu0
      %1021 = vdwg.mxu0
      %v1022 = vpack.c.bf16 %v987, %v984
      %v1023 = vpack.c.bf16 %v995, %v992
      %v1024 = vpack.c.bf16 %v1003, %v1000
      %v1025 = vpack.c.bf16 %v1011, %v1008
      %v1026 = vpack.c.bf16 %v1019, %v1016
      %1027 = vst.msk [vmem:[#allocation3] sm:$0xff] %vm375, %v1022
      %1028 = vst.msk [vmem:[#allocation3 + $0x8] sm:$0xff] %vm375, %v1023
      %1029 = vst.msk [vmem:[#allocation3 + $0x10] sm:$0xff] %vm375, %v1024
      %1030 = vst.msk [vmem:[#allocation3 + $0x18] sm:$0xff] %vm375, %v1025
      %1031 = vst.msk [vmem:[#allocation3 + $0x20] sm:$0xff] %vm375, %v1026
      %s1032 = scalar_lea.vmem %s4, 16
      %v1033 = vld [vmem:[%s1032] sm:$0xf]
      %v1034 = vld [vmem:[%s1032 + $0x4] sm:$0xf]
      %v1035 = vld [vmem:[%s1032 + $0x8] sm:$0xf]
      %v1036 = vld [vmem:[%s1032 + $0xc] sm:$0xf]
      %v1041 = vunpack.c.l.b16 %v1033
      %v1042 = vunpack.c.l.b16 %v1034
      %v1043 = vunpack.c.l.b16 %v1035
      %v1044 = vunpack.c.l.b16 %v1036
      %v1045 = vpack.c.b16 %v1042, %v1041
      %v1046 = vpack.c.b16 %v1044, %v1043
      %1049 = vmatprep.subr.bf16.mxu0 0
      %1050 = vmatpush1.bf16.msra.mxu0 %v1045
      %1051 = vmatprep.subr.bf16.mxu0 0
      %1052 = vmatpush1.bf16.msra.mxu0 %v1046
      %1053 = vmatprep.subr.bf16.mxu0 0
      %1054 = vmatpush1.bf16.msra.mxu0 0
      %1055 = vmatprep.subr.bf16.mxu0 0
      %1056 = vmatpush1.bf16.msra.mxu0 0
      %1057 = vmatprep.subr.bf16.mxu0 0
      %1058 = vmatpush1.bf16.msra.mxu0 0
      %1059 = vmatprep.subr.bf16.mxu0 0
      %1060 = vmatpush1.bf16.msra.mxu0 0
      %1061 = vmatprep.subr.bf16.mxu0 0
      %1062 = vmatpush1.bf16.msra.mxu0 0
      %1063 = vmatprep.subr.bf16.mxu0 0
      %1064 = vmatpush1.bf16.msra.mxu0 0
      %1065 = vmatprep.subr.bf16.mxu0 0
      %1066 = vmatpush1.bf16.msra.mxu0 0
      %1067 = vmatprep.subr.bf16.mxu0 0
      %1068 = vmatpush1.bf16.msra.mxu0 0
      %1069 = vmatprep.subr.bf16.mxu0 0
      %1070 = vmatpush1.bf16.msra.mxu0 0
      %1071 = vmatprep.subr.bf16.mxu0 0
      %1072 = vmatpush1.bf16.msra.mxu0 0
      %1073 = vmatprep.subr.bf16.mxu0 0
      %1074 = vmatpush1.bf16.msra.mxu0 0
      %1075 = vmatprep.subr.bf16.mxu0 0
      %1076 = vmatpush1.bf16.msra.mxu0 0
      %1077 = vmatprep.subr.bf16.mxu0 0
      %1078 = vmatpush1.bf16.msra.mxu0 0
      %1079 = vmatprep.subr.bf16.mxu0 0
      %1080 = vmatpush1.bf16.msra.mxu0 0
      %1081 = vmatprep.mubr.bf16.mxu0 0
      %1082 = vmatmul.mubr.bf16.gmra.mrb[0].mxu0 %v944
      %v1083 = vpop.f32.mrb[0].mxu0
      %v1084 = vadd.f32 0.0, %v1083
      %v1085 = vpop.f32.mrb[0].mxu0
      %v1086 = vpop.f32.mrb[0].mxu0
      %v1087 = vadd.f32 0.0, %v1086
      %v1088 = vpop.f32.mrb[0].mxu0
      %1089 = vmatprep.mubr.bf16.mxu0 0
      %1090 = vmatmul.mubr.bf16.gmra.mrb[0].mxu0 %v377
      %v1091 = vpop.f32.mrb[0].mxu0
      %v1092 = vadd.f32 0.0, %v1091
      %v1093 = vpop.f32.mrb[0].mxu0
      %v1094 = vpop.f32.mrb[0].mxu0
      %v1095 = vadd.f32 0.0, %v1094
      %v1096 = vpop.f32.mrb[0].mxu0
      %1097 = vmatprep.mubr.bf16.mxu0 0
      %1098 = vmatmul.mubr.bf16.gmra.mrb[0].mxu0 %v380
      %v1099 = vpop.f32.mrb[0].mxu0
      %v1100 = vadd.f32 0.0, %v1099
      %v1101 = vpop.f32.mrb[0].mxu0
      %v1102 = vpop.f32.mrb[0].mxu0
      %v1103 = vadd.f32 0.0, %v1102
      %v1104 = vpop.f32.mrb[0].mxu0
      %1105 = vmatprep.mubr.bf16.mxu0 0
      %1106 = vmatmul.mubr.bf16.gmra.mrb[0].mxu0 %v383
      %v1107 = vpop.f32.mrb[0].mxu0
      %v1108 = vadd.f32 0.0, %v1107
      %v1109 = vpop.f32.mrb[0].mxu0
      %v1110 = vpop.f32.mrb[0].mxu0
      %v1111 = vadd.f32 0.0, %v1110
      %v1112 = vpop.f32.mrb[0].mxu0
      %1113 = vmatprep.mubr.bf16.mxu0 0
      %1114 = vmatmul.mubr.bf16.gmra.mrb[0].mxu0 %v947
      %v1115 = vpop.f32.mrb[0].mxu0
      %v1116 = vadd.f32 0.0, %v1115
      %v1117 = vpop.f32.mrb[0].mxu0
      %v1118 = vpop.f32.mrb[0].mxu0
      %v1119 = vadd.f32 0.0, %v1118
      %v1120 = vpop.f32.mrb[0].mxu0
      %1121 = vdwg.mxu0
      %v1122 = vpack.c.bf16 %v1087, %v1084
      %v1123 = vpack.c.bf16 %v1095, %v1092
      %v1124 = vpack.c.bf16 %v1103, %v1100
      %v1125 = vpack.c.bf16 %v1111, %v1108
      %v1126 = vpack.c.bf16 %v1119, %v1116
      %1127 = vst.msk [vmem:[#allocation3 + $0x28] sm:$0xff] %vm375, %v1122
      %1128 = vst.msk [vmem:[#allocation3 + $0x30] sm:$0xff] %vm375, %v1123
      %1129 = vst.msk [vmem:[#allocation3 + $0x38] sm:$0xff] %vm375, %v1124
      %1130 = vst.msk [vmem:[#allocation3 + $0x40] sm:$0xff] %vm375, %v1125
      %1131 = vst.msk [vmem:[#allocation3 + $0x48] sm:$0xff] %vm375, %v1126
      %s1132 = scalar_lea.vmem %s4, 32
      %v1133 = vld [vmem:[%s1132] sm:$0xf]
      %v1134 = vld [vmem:[%s1132 + $0x4] sm:$0xf]
      %v1135 = vld [vmem:[%s1132 + $0x8] sm:$0xf]
      %v1136 = vld [vmem:[%s1132 + $0xc] sm:$0xf]
      %v1141 = vunpack.c.l.b16 %v1133
      %v1142 = vunpack.c.l.b16 %v1134
      %v1143 = vunpack.c.l.b16 %v1135
      %v1144 = vunpack.c.l.b16 %v1136
      %v1145 = vpack.c.b16 %v1142, %v1141
      %v1146 = vpack.c.b16 %v1144, %v1143
      %1149 = vmatprep.subr.bf16.mxu0 0
      %1150 = vmatpush1.bf16.msra.mxu0 %v1145
      %1151 = vmatprep.subr.bf16.mxu0 0
      %1152 = vmatpush1.bf16.msra.mxu0 %v1146
      %1153 = vmatprep.subr.bf16.mxu0 0
      %1154 = vmatpush1.bf16.msra.mxu0 0
      %1155 = vmatprep.subr.bf16.mxu0 0
      %1156 = vmatpush1.bf16.msra.mxu0 0
      %1157 = vmatprep.subr.bf16.mxu0 0
      %1158 = vmatpush1.bf16.msra.mxu0 0
      %1159 = vmatprep.subr.bf16.mxu0 0
      %1160 = vmatpush1.bf16.msra.mxu0 0
      %1161 = vmatprep.subr.bf16.mxu0 0
      %1162 = vmatpush1.bf16.msra.mxu0 0
      %1163 = vmatprep.subr.bf16.mxu0 0
      %1164 = vmatpush1.bf16.msra.mxu0 0
      %1165 = vmatprep.subr.bf16.mxu0 0
      %1166 = vmatpush1.bf16.msra.mxu0 0
      %1167 = vmatprep.subr.bf16.mxu0 0
      %1168 = vmatpush1.bf16.msra.mxu0 0
      %1169 = vmatprep.subr.bf16.mxu0 0
      %1170 = vmatpush1.bf16.msra.mxu0 0
      %1171 = vmatprep.subr.bf16.mxu0 0
      %1172 = vmatpush1.bf16.msra.mxu0 0
      %1173 = vmatprep.subr.bf16.mxu0 0
      %1174 = vmatpush1.bf16.msra.mxu0 0
      %1175 = vmatprep.subr.bf16.mxu0 0
      %1176 = vmatpush1.bf16.msra.mxu0 0
      %1177 = vmatprep.subr.bf16.mxu0 0
      %1178 = vmatpush1.bf16.msra.mxu0 0
      %1179 = vmatprep.subr.bf16.mxu0 0
      %1180 = vmatpush1.bf16.msra.mxu0 0
      %1181 = vmatprep.mubr.bf16.mxu0 0
      %1182 = vmatmul.mubr.bf16.gmra.mrb[0].mxu0 %v944
      %v1183 = vpop.f32.mrb[0].mxu0
      %v1184 = vadd.f32 0.0, %v1183
      %v1185 = vpop.f32.mrb[0].mxu0
      %v1186 = vpop.f32.mrb[0].mxu0
      %v1187 = vadd.f32 0.0, %v1186
      %v1188 = vpop.f32.mrb[0].mxu0
      %1189 = vmatprep.mubr.bf16.mxu0 0
      %1190 = vmatmul.mubr.bf16.gmra.mrb[0].mxu0 %v377
      %v1191 = vpop.f32.mrb[0].mxu0
      %v1192 = vadd.f32 0.0, %v1191
      %v1193 = vpop.f32.mrb[0].mxu0
      %v1194 = vpop.f32.mrb[0].mxu0
      %v1195 = vadd.f32 0.0, %v1194
      %v1196 = vpop.f32.mrb[0].mxu0
      %1197 = vmatprep.mubr.bf16.mxu0 0
      %1198 = vmatmul.mubr.bf16.gmra.mrb[0].mxu0 %v380
      %v1199 = vpop.f32.mrb[0].mxu0
      %v1200 = vadd.f32 0.0, %v1199
      %v1201 = vpop.f32.mrb[0].mxu0
      %v1202 = vpop.f32.mrb[0].mxu0
      %v1203 = vadd.f32 0.0, %v1202
      %v1204 = vpop.f32.mrb[0].mxu0
      %1205 = vmatprep.mubr.bf16.mxu0 0
      %1206 = vmatmul.mubr.bf16.gmra.mrb[0].mxu0 %v383
      %v1207 = vpop.f32.mrb[0].mxu0
      %v1208 = vadd.f32 0.0, %v1207
      %v1209 = vpop.f32.mrb[0].mxu0
      %v1210 = vpop.f32.mrb[0].mxu0
      %v1211 = vadd.f32 0.0, %v1210
      %v1212 = vpop.f32.mrb[0].mxu0
      %1213 = vmatprep.mubr.bf16.mxu0 0
      %1214 = vmatmul.mubr.bf16.gmra.mrb[0].mxu0 %v947
      %v1215 = vpop.f32.mrb[0].mxu0
      %v1216 = vadd.f32 0.0, %v1215
      %v1217 = vpop.f32.mrb[0].mxu0
      %v1218 = vpop.f32.mrb[0].mxu0
      %v1219 = vadd.f32 0.0, %v1218
      %v1220 = vpop.f32.mrb[0].mxu0
      %1221 = vdwg.mxu0
      %v1222 = vpack.c.bf16 %v1187, %v1184
      %v1223 = vpack.c.bf16 %v1195, %v1192
      %v1224 = vpack.c.bf16 %v1203, %v1200
      %v1225 = vpack.c.bf16 %v1211, %v1208
      %v1226 = vpack.c.bf16 %v1219, %v1216
      %1227 = vst.msk [vmem:[#allocation3 + $0x50] sm:$0xff] %vm375, %v1222
      %1228 = vst.msk [vmem:[#allocation3 + $0x58] sm:$0xff] %vm375, %v1223
      %1229 = vst.msk [vmem:[#allocation3 + $0x60] sm:$0xff] %vm375, %v1224
      %1230 = vst.msk [vmem:[#allocation3 + $0x68] sm:$0xff] %vm375, %v1225
      %1231 = vst.msk [vmem:[#allocation3 + $0x70] sm:$0xff] %vm375, %v1226
      %v1232 = vld [vmem:[%s2] sm:$0xff]
      %v1233 = vld [vmem:[%s2 + $0x8] sm:$0xff]
      %v1234 = vld [vmem:[%s2 + $0x10] sm:$0xff]
      %v1235 = vld [vmem:[%s2 + $0x18] sm:$0xff]
      %v1236 = vld [vmem:[%s2 + $0x20] sm:$0xff]
      %v1237 = vld [vmem:[%s2 + $0x28] sm:$0xff]
      %v1238 = vld [vmem:[%s2 + $0x30] sm:$0xff]
      %v1239 = vld [vmem:[%s2 + $0x38] sm:$0xff]
      %v1240 = vld [vmem:[%s2 + $0x40] sm:$0xff]
      %v1241 = vld [vmem:[%s2 + $0x48] sm:$0xff]
      %v1242 = vld [vmem:[#allocation3] sm:$0xff]
      %v1243 = vld [vmem:[#allocation3 + $0x8] sm:$0xff]
      %v1244 = vld [vmem:[#allocation3 + $0x10] sm:$0xff]
      %v1245 = vld [vmem:[#allocation3 + $0x18] sm:$0xff]
      %v1246 = vld [vmem:[#allocation3 + $0x20] sm:$0xff]
      %v1247 = vld [vmem:[#allocation3 + $0x28] sm:$0xff]
      %v1248 = vld [vmem:[#allocation3 + $0x30] sm:$0xff]
      %v1249 = vld [vmem:[#allocation3 + $0x38] sm:$0xff]
      %v1250 = vld [vmem:[#allocation3 + $0x40] sm:$0xff]
      %v1251 = vld [vmem:[#allocation3 + $0x48] sm:$0xff]
      %v1252 = vld [vmem:[#allocation3 + $0x50] sm:$0xff]
      %v1253 = vld [vmem:[#allocation3 + $0x58] sm:$0xff]
      %v1254 = vld [vmem:[#allocation3 + $0x60] sm:$0xff]
      %v1255 = vld [vmem:[#allocation3 + $0x68] sm:$0xff]
      %v1256 = vld [vmem:[#allocation3 + $0x70] sm:$0xff]
      %s1257 = scalar_lea.vmem %s5, 1
      %v1258 = vld [vmem:[%s1257] sm:$0x1]
      %v1260 = vlaneseq
      %v1261 = vshrl.u32 %v1260, 7
      %v1262 = vsub.s32 0, %v1261
      %v1263 = vrot.slane %v1258, %v1262
      %v1275 = vunpack.c.l.b16 %v1232
      %v1276 = vunpack.c.h.b16 %v1232
      %v1277 = vunpack.c.l.b16 %v1233
      %v1278 = vunpack.c.h.b16 %v1233
      %v1279 = vunpack.c.l.b16 %v1234
      %v1280 = vunpack.c.h.b16 %v1234
      %v1281 = vunpack.c.l.b16 %v1235
      %v1282 = vunpack.c.h.b16 %v1235
      %v1283 = vunpack.c.l.b16 %v1236
      %v1284 = vunpack.c.h.b16 %v1236
      %v1285 = vunpack.c.l.b16 %v1237
      %v1286 = vunpack.c.h.b16 %v1237
      %v1287 = vunpack.c.l.b16 %v1238
      %v1288 = vunpack.c.h.b16 %v1238
      %v1289 = vunpack.c.l.b16 %v1239
      %v1290 = vunpack.c.h.b16 %v1239
      %v1291 = vunpack.c.l.b16 %v1240
      %v1292 = vunpack.c.h.b16 %v1240
      %v1293 = vunpack.c.l.b16 %v1241
      %v1294 = vunpack.c.h.b16 %v1241
      %v1295 = vpack.c.b16 %v1277, %v1275
      %v1296 = vpack.c.b16 %v1278, %v1276
      %v1297 = vpack.c.b16 %v1281, %v1279
      %v1298 = vpack.c.b16 %v1282, %v1280
      %v1299 = vpack.c.b16 %v1285, %v1283
      %v1300 = vpack.c.b16 %v1286, %v1284
      %v1301 = vpack.c.b16 %v1289, %v1287
      %v1302 = vpack.c.b16 %v1290, %v1288
      %v1303 = vpack.c.b16 %v1293, %v1291
      %v1304 = vpack.c.b16 %v1294, %v1292
      %vm1310 = vcmask 916480
      %v1312 = vsel %vm1310, %v1296, 0
      %v1315 = vsel %vm1310, %v1298, 0
      %v1318 = vsel %vm1310, %v1300, 0
      %v1321 = vsel %vm1310, %v1302, 0
      %v1324 = vsel %vm1310, %v1304, 0
      %1326 = vmatprep.subr.bf16.mxu0 0
      %1327 = vmatpush1.bf16.msra.mxu0 %v1242
      %1328 = vmatprep.subr.bf16.mxu0 0
      %1329 = vmatpush1.bf16.msra.mxu0 %v1243
      %1330 = vmatprep.subr.bf16.mxu0 0
      %1331 = vmatpush1.bf16.msra.mxu0 %v1244
      %1332 = vmatprep.subr.bf16.mxu0 0
      %1333 = vmatpush1.bf16.msra.mxu0 %v1245
      %1334 = vmatprep.subr.bf16.mxu0 0
      %1335 = vmatpush1.bf16.msra.mxu0 %v1246
      %1336 = vmatprep.subr.bf16.mxu0 0
      %1337 = vmatpush1.bf16.msra.mxu0 %v1247
      %1338 = vmatprep.subr.bf16.mxu0 0
      %1339 = vmatpush1.bf16.msra.mxu0 %v1248
      %1340 = vmatprep.subr.bf16.mxu0 0
      %1341 = vmatpush1.bf16.msra.mxu0 %v1249
      %1342 = vmatprep.subr.bf16.mxu0 0
      %1343 = vmatpush1.bf16.msra.mxu0 %v1250
      %1344 = vmatprep.subr.bf16.mxu0 0
      %1345 = vmatpush1.bf16.msra.mxu0 %v1251
      %1346 = vmatprep.subr.bf16.mxu0 0
      %1347 = vmatpush1.bf16.msra.mxu0 %v1252
      %1348 = vmatprep.subr.bf16.mxu0 0
      %1349 = vmatpush1.bf16.msra.mxu0 %v1253
      %1350 = vmatprep.subr.bf16.mxu0 0
      %1351 = vmatpush1.bf16.msra.mxu0 %v1254
      %1352 = vmatprep.subr.bf16.mxu0 0
      %1353 = vmatpush1.bf16.msra.mxu0 %v1255
      %1354 = vmatprep.subr.bf16.mxu0 0
      %1355 = vmatpush1.bf16.msra.mxu0 %v1256
      %1356 = vmatprep.subr.bf16.mxu0 0
      %1357 = vmatpush1.bf16.msra.mxu0 0
      %1358 = vmatprep.mubr.bf16.mxu0 %v1312
      %1359 = vmatmul.mubr.bf16.gmra.mrb[0].mxu0 %v1295
      %v1360 = vpop.f32.mrb[0].mxu0
      %v1361 = vadd.f32 %v1263, %v1360
      %v1362 = vpop.f32.mrb[0].mxu0
      %v1363 = vpop.f32.mrb[0].mxu0
      %v1364 = vadd.f32 %v1263, %v1363
      %v1365 = vpop.f32.mrb[0].mxu0
      %1366 = vmatprep.mubr.bf16.mxu0 %v1315
      %1367 = vmatmul.mubr.bf16.gmra.mrb[0].mxu0 %v1297
      %v1368 = vpop.f32.mrb[0].mxu0
      %v1369 = vadd.f32 %v1263, %v1368
      %v1370 = vpop.f32.mrb[0].mxu0
      %v1371 = vpop.f32.mrb[0].mxu0
      %v1372 = vadd.f32 %v1263, %v1371
      %v1373 = vpop.f32.mrb[0].mxu0
      %1374 = vmatprep.mubr.bf16.mxu0 %v1318
      %1375 = vmatmul.mubr.bf16.gmra.mrb[0].mxu0 %v1299
      %v1376 = vpop.f32.mrb[0].mxu0
      %v1377 = vadd.f32 %v1263, %v1376
      %v1378 = vpop.f32.mrb[0].mxu0
      %v1379 = vpop.f32.mrb[0].mxu0
      %v1380 = vadd.f32 %v1263, %v1379
      %v1381 = vpop.f32.mrb[0].mxu0
      %1382 = vmatprep.mubr.bf16.mxu0 %v1321
      %1383 = vmatmul.mubr.bf16.gmra.mrb[0].mxu0 %v1301
      %v1384 = vpop.f32.mrb[0].mxu0
      %v1385 = vadd.f32 %v1263, %v1384
      %v1386 = vpop.f32.mrb[0].mxu0
      %v1387 = vpop.f32.mrb[0].mxu0
      %v1388 = vadd.f32 %v1263, %v1387
      %v1389 = vpop.f32.mrb[0].mxu0
      %1390 = vmatprep.mubr.bf16.mxu0 %v1324
      %1391 = vmatmul.mubr.bf16.gmra.mrb[0].mxu0 %v1303
      %v1392 = vpop.f32.mrb[0].mxu0
      %v1393 = vadd.f32 %v1263, %v1392
      %v1394 = vpop.f32.mrb[0].mxu0
      %v1395 = vpop.f32.mrb[0].mxu0
      %v1396 = vadd.f32 %v1263, %v1395
      %v1397 = vpop.f32.mrb[0].mxu0
      %1398 = vdwg.mxu0
      %v1399 = vmax.f32 %v1361, 0.0
      %v1400 = vmax.f32 %v1364, 0.0
      %v1401 = vmax.f32 %v1369, 0.0
      %v1402 = vmax.f32 %v1372, 0.0
      %v1403 = vmax.f32 %v1377, 0.0
      %v1404 = vmax.f32 %v1380, 0.0
      %v1405 = vmax.f32 %v1385, 0.0
      %v1406 = vmax.f32 %v1388, 0.0
      %v1407 = vmax.f32 %v1393, 0.0
      %v1408 = vmax.f32 %v1396, 0.0
      %v1409 = vpack.c.bf16 %v1400, %v1399
      %v1410 = vpack.c.bf16 %v1402, %v1401
      %v1411 = vpack.c.bf16 %v1404, %v1403
      %v1412 = vpack.c.bf16 %v1406, %v1405
      %v1413 = vpack.c.bf16 %v1408, %v1407
      %v1414 = vld [vmem:[%s7] sm:$0xf]
      %v1415 = vld [vmem:[%s7 + $0x4] sm:$0xf]
      %v1416 = vld [vmem:[%s7 + $0x8] sm:$0xf]
      %v1417 = vld [vmem:[%s7 + $0xc] sm:$0xf]
      %v1422 = vunpack.c.l.b16 %v1414
      %v1423 = vunpack.c.l.b16 %v1415
      %v1424 = vunpack.c.l.b16 %v1416
      %v1425 = vunpack.c.l.b16 %v1417
      %v1426 = vpack.c.b16 %v1423, %v1422
      %v1427 = vpack.c.b16 %v1425, %v1424
      %v1431 = vsel %vm375, %v1409, 0
      %1433 = vmatprep.subr.bf16.mxu0 0
      %1434 = vmatpush1.bf16.msra.mxu0 %v1426
      %1435 = vmatprep.subr.bf16.mxu0 0
      %1436 = vmatpush1.bf16.msra.mxu0 %v1427
      %1437 = vmatprep.subr.bf16.mxu0 0
      %1438 = vmatpush1.bf16.msra.mxu0 0
      %1439 = vmatprep.subr.bf16.mxu0 0
      %1440 = vmatpush1.bf16.msra.mxu0 0
      %1441 = vmatprep.subr.bf16.mxu0 0
      %1442 = vmatpush1.bf16.msra.mxu0 0
      %1443 = vmatprep.subr.bf16.mxu0 0
      %1444 = vmatpush1.bf16.msra.mxu0 0
      %1445 = vmatprep.subr.bf16.mxu0 0
      %1446 = vmatpush1.bf16.msra.mxu0 0
      %1447 = vmatprep.subr.bf16.mxu0 0
      %1448 = vmatpush1.bf16.msra.mxu0 0
      %1449 = vmatprep.subr.bf16.mxu0 0
      %1450 = vmatpush1.bf16.msra.mxu0 0
      %1451 = vmatprep.subr.bf16.mxu0 0
      %1452 = vmatpush1.bf16.msra.mxu0 0
      %1453 = vmatprep.subr.bf16.mxu0 0
      %1454 = vmatpush1.bf16.msra.mxu0 0
      %1455 = vmatprep.subr.bf16.mxu0 0
      %1456 = vmatpush1.bf16.msra.mxu0 0
      %1457 = vmatprep.subr.bf16.mxu0 0
      %1458 = vmatpush1.bf16.msra.mxu0 0
      %1459 = vmatprep.subr.bf16.mxu0 0
      %1460 = vmatpush1.bf16.msra.mxu0 0
      %1461 = vmatprep.subr.bf16.mxu0 0
      %1462 = vmatpush1.bf16.msra.mxu0 0
      %1463 = vmatprep.subr.bf16.mxu0 0
      %1464 = vmatpush1.bf16.msra.mxu0 0
      %1465 = vmatprep.mubr.bf16.mxu0 0
      %1466 = vmatmul.mubr.bf16.gmra.mrb[0].mxu0 %v1431
      %v1467 = vpop.f32.mrb[0].mxu0
      %v1468 = vadd.f32 0.0, %v1467
      %v1469 = vpop.f32.mrb[0].mxu0
      %v1470 = vpop.f32.mrb[0].mxu0
      %v1471 = vadd.f32 0.0, %v1470
      %v1472 = vpop.f32.mrb[0].mxu0
      %1473 = vdwg.mxu0
      %v1474 = vadd.f32 %v915, %v1468
      %v1475 = vadd.f32 %v916, %v1471
      %s1476 = scalar_lea.vmem %s7, 16
      %v1477 = vld [vmem:[%s1476] sm:$0xf]
      %v1478 = vld [vmem:[%s1476 + $0x4] sm:$0xf]
      %v1479 = vld [vmem:[%s1476 + $0x8] sm:$0xf]
      %v1480 = vld [vmem:[%s1476 + $0xc] sm:$0xf]
      %v1485 = vunpack.c.l.b16 %v1477
      %v1486 = vunpack.c.l.b16 %v1478
      %v1487 = vunpack.c.l.b16 %v1479
      %v1488 = vunpack.c.l.b16 %v1480
      %v1489 = vpack.c.b16 %v1486, %v1485
      %v1490 = vpack.c.b16 %v1488, %v1487
      %v1494 = vsel %vm375, %v1410, 0
      %1496 = vmatprep.subr.bf16.mxu0 0
      %1497 = vmatpush1.bf16.msra.mxu0 %v1489
      %1498 = vmatprep.subr.bf16.mxu0 0
      %1499 = vmatpush1.bf16.msra.mxu0 %v1490
      %1500 = vmatprep.subr.bf16.mxu0 0
      %1501 = vmatpush1.bf16.msra.mxu0 0
      %1502 = vmatprep.subr.bf16.mxu0 0
      %1503 = vmatpush1.bf16.msra.mxu0 0
      %1504 = vmatprep.subr.bf16.mxu0 0
      %1505 = vmatpush1.bf16.msra.mxu0 0
      %1506 = vmatprep.subr.bf16.mxu0 0
      %1507 = vmatpush1.bf16.msra.mxu0 0
      %1508 = vmatprep.subr.bf16.mxu0 0
      %1509 = vmatpush1.bf16.msra.mxu0 0
      %1510 = vmatprep.subr.bf16.mxu0 0
      %1511 = vmatpush1.bf16.msra.mxu0 0
      %1512 = vmatprep.subr.bf16.mxu0 0
      %1513 = vmatpush1.bf16.msra.mxu0 0
      %1514 = vmatprep.subr.bf16.mxu0 0
      %1515 = vmatpush1.bf16.msra.mxu0 0
      %1516 = vmatprep.subr.bf16.mxu0 0
      %1517 = vmatpush1.bf16.msra.mxu0 0
      %1518 = vmatprep.subr.bf16.mxu0 0
      %1519 = vmatpush1.bf16.msra.mxu0 0
      %1520 = vmatprep.subr.bf16.mxu0 0
      %1521 = vmatpush1.bf16.msra.mxu0 0
      %1522 = vmatprep.subr.bf16.mxu0 0
      %1523 = vmatpush1.bf16.msra.mxu0 0
      %1524 = vmatprep.subr.bf16.mxu0 0
      %1525 = vmatpush1.bf16.msra.mxu0 0
      %1526 = vmatprep.subr.bf16.mxu0 0
      %1527 = vmatpush1.bf16.msra.mxu0 0
      %1528 = vmatprep.mubr.bf16.mxu0 0
      %1529 = vmatmul.mubr.bf16.gmra.mrb[0].mxu0 %v1494
      %v1530 = vpop.f32.mrb[0].mxu0
      %v1531 = vadd.f32 0.0, %v1530
      %v1532 = vpop.f32.mrb[0].mxu0
      %v1533 = vpop.f32.mrb[0].mxu0
      %v1534 = vadd.f32 0.0, %v1533
      %v1535 = vpop.f32.mrb[0].mxu0
      %1536 = vdwg.mxu0
      %v1537 = vadd.f32 %v1474, %v1531
      %v1538 = vadd.f32 %v1475, %v1534
      %s1539 = scalar_lea.vmem %s7, 32
      %v1540 = vld [vmem:[%s1539] sm:$0xf]
      %v1541 = vld [vmem:[%s1539 + $0x4] sm:$0xf]
      %v1542 = vld [vmem:[%s1539 + $0x8] sm:$0xf]
      %v1543 = vld [vmem:[%s1539 + $0xc] sm:$0xf]
      %v1548 = vunpack.c.l.b16 %v1540
      %v1549 = vunpack.c.l.b16 %v1541
      %v1550 = vunpack.c.l.b16 %v1542
      %v1551 = vunpack.c.l.b16 %v1543
      %v1552 = vpack.c.b16 %v1549, %v1548
      %v1553 = vpack.c.b16 %v1551, %v1550
      %v1557 = vsel %vm375, %v1411, 0
      %1559 = vmatprep.subr.bf16.mxu0 0
      %1560 = vmatpush1.bf16.msra.mxu0 %v1552
      %1561 = vmatprep.subr.bf16.mxu0 0
      %1562 = vmatpush1.bf16.msra.mxu0 %v1553
      %1563 = vmatprep.subr.bf16.mxu0 0
      %1564 = vmatpush1.bf16.msra.mxu0 0
      %1565 = vmatprep.subr.bf16.mxu0 0
      %1566 = vmatpush1.bf16.msra.mxu0 0
      %1567 = vmatprep.subr.bf16.mxu0 0
      %1568 = vmatpush1.bf16.msra.mxu0 0
      %1569 = vmatprep.subr.bf16.mxu0 0
      %1570 = vmatpush1.bf16.msra.mxu0 0
      %1571 = vmatprep.subr.bf16.mxu0 0
      %1572 = vmatpush1.bf16.msra.mxu0 0
      %1573 = vmatprep.subr.bf16.mxu0 0
      %1574 = vmatpush1.bf16.msra.mxu0 0
      %1575 = vmatprep.subr.bf16.mxu0 0
      %1576 = vmatpush1.bf16.msra.mxu0 0
      %1577 = vmatprep.subr.bf16.mxu0 0
      %1578 = vmatpush1.bf16.msra.mxu0 0
      %1579 = vmatprep.subr.bf16.mxu0 0
      %1580 = vmatpush1.bf16.msra.mxu0 0
      %1581 = vmatprep.subr.bf16.mxu0 0
      %1582 = vmatpush1.bf16.msra.mxu0 0
      %1583 = vmatprep.subr.bf16.mxu0 0
      %1584 = vmatpush1.bf16.msra.mxu0 0
      %1585 = vmatprep.subr.bf16.mxu0 0
      %1586 = vmatpush1.bf16.msra.mxu0 0
      %1587 = vmatprep.subr.bf16.mxu0 0
      %1588 = vmatpush1.bf16.msra.mxu0 0
      %1589 = vmatprep.subr.bf16.mxu0 0
      %1590 = vmatpush1.bf16.msra.mxu0 0
      %1591 = vmatprep.mubr.bf16.mxu0 0
      %1592 = vmatmul.mubr.bf16.gmra.mrb[0].mxu0 %v1557
      %v1593 = vpop.f32.mrb[0].mxu0
      %v1594 = vadd.f32 0.0, %v1593
      %v1595 = vpop.f32.mrb[0].mxu0
      %v1596 = vpop.f32.mrb[0].mxu0
      %v1597 = vadd.f32 0.0, %v1596
      %v1598 = vpop.f32.mrb[0].mxu0
      %1599 = vdwg.mxu0
      %v1600 = vadd.f32 %v1537, %v1594
      %v1601 = vadd.f32 %v1538, %v1597
      %s1602 = scalar_lea.vmem %s7, 48
      %v1603 = vld [vmem:[%s1602] sm:$0xf]
      %v1604 = vld [vmem:[%s1602 + $0x4] sm:$0xf]
      %v1605 = vld [vmem:[%s1602 + $0x8] sm:$0xf]
      %v1606 = vld [vmem:[%s1602 + $0xc] sm:$0xf]
      %v1611 = vunpack.c.l.b16 %v1603
      %v1612 = vunpack.c.l.b16 %v1604
      %v1613 = vunpack.c.l.b16 %v1605
      %v1614 = vunpack.c.l.b16 %v1606
      %v1615 = vpack.c.b16 %v1612, %v1611
      %v1616 = vpack.c.b16 %v1614, %v1613
      %v1620 = vsel %vm375, %v1412, 0
      %1622 = vmatprep.subr.bf16.mxu0 0
      %1623 = vmatpush1.bf16.msra.mxu0 %v1615
      %1624 = vmatprep.subr.bf16.mxu0 0
      %1625 = vmatpush1.bf16.msra.mxu0 %v1616
      %1626 = vmatprep.subr.bf16.mxu0 0
      %1627 = vmatpush1.bf16.msra.mxu0 0
      %1628 = vmatprep.subr.bf16.mxu0 0
      %1629 = vmatpush1.bf16.msra.mxu0 0
      %1630 = vmatprep.subr.bf16.mxu0 0
      %1631 = vmatpush1.bf16.msra.mxu0 0
      %1632 = vmatprep.subr.bf16.mxu0 0
      %1633 = vmatpush1.bf16.msra.mxu0 0
      %1634 = vmatprep.subr.bf16.mxu0 0
      %1635 = vmatpush1.bf16.msra.mxu0 0
      %1636 = vmatprep.subr.bf16.mxu0 0
      %1637 = vmatpush1.bf16.msra.mxu0 0
      %1638 = vmatprep.subr.bf16.mxu0 0
      %1639 = vmatpush1.bf16.msra.mxu0 0
      %1640 = vmatprep.subr.bf16.mxu0 0
      %1641 = vmatpush1.bf16.msra.mxu0 0
      %1642 = vmatprep.subr.bf16.mxu0 0
      %1643 = vmatpush1.bf16.msra.mxu0 0
      %1644 = vmatprep.subr.bf16.mxu0 0
      %1645 = vmatpush1.bf16.msra.mxu0 0
      %1646 = vmatprep.subr.bf16.mxu0 0
      %1647 = vmatpush1.bf16.msra.mxu0 0
      %1648 = vmatprep.subr.bf16.mxu0 0
      %1649 = vmatpush1.bf16.msra.mxu0 0
      %1650 = vmatprep.subr.bf16.mxu0 0
      %1651 = vmatpush1.bf16.msra.mxu0 0
      %1652 = vmatprep.subr.bf16.mxu0 0
      %1653 = vmatpush1.bf16.msra.mxu0 0
      %1654 = vmatprep.mubr.bf16.mxu0 0
      %1655 = vmatmul.mubr.bf16.gmra.mrb[0].mxu0 %v1620
      %v1656 = vpop.f32.mrb[0].mxu0
      %v1657 = vadd.f32 0.0, %v1656
      %v1658 = vpop.f32.mrb[0].mxu0
      %v1659 = vpop.f32.mrb[0].mxu0
      %v1660 = vadd.f32 0.0, %v1659
      %v1661 = vpop.f32.mrb[0].mxu0
      %1662 = vdwg.mxu0
      %v1663 = vadd.f32 %v1600, %v1657
      %v1664 = vadd.f32 %v1601, %v1660
      %s1665 = scalar_lea.vmem %s7, 64
      %v1666 = vld [vmem:[%s1665] sm:$0xf]
      %v1667 = vld [vmem:[%s1665 + $0x4] sm:$0xf]
      %v1668 = vld [vmem:[%s1665 + $0x8] sm:$0xf]
      %v1669 = vld [vmem:[%s1665 + $0xc] sm:$0xf]
      %v1674 = vunpack.c.l.b16 %v1666
      %v1675 = vunpack.c.l.b16 %v1667
      %v1676 = vunpack.c.l.b16 %v1668
      %v1677 = vunpack.c.l.b16 %v1669
      %v1678 = vpack.c.b16 %v1675, %v1674
      %v1679 = vpack.c.b16 %v1677, %v1676
      %v1683 = vsel %vm375, %v1413, 0
      %1685 = vmatprep.subr.bf16.mxu0 0
      %1686 = vmatpush1.bf16.msra.mxu0 %v1678
      %1687 = vmatprep.subr.bf16.mxu0 0
      %1688 = vmatpush1.bf16.msra.mxu0 %v1679
      %1689 = vmatprep.subr.bf16.mxu0 0
      %1690 = vmatpush1.bf16.msra.mxu0 0
      %1691 = vmatprep.subr.bf16.mxu0 0
      %1692 = vmatpush1.bf16.msra.mxu0 0
      %1693 = vmatprep.subr.bf16.mxu0 0
      %1694 = vmatpush1.bf16.msra.mxu0 0
      %1695 = vmatprep.subr.bf16.mxu0 0
      %1696 = vmatpush1.bf16.msra.mxu0 0
      %1697 = vmatprep.subr.bf16.mxu0 0
      %1698 = vmatpush1.bf16.msra.mxu0 0
      %1699 = vmatprep.subr.bf16.mxu0 0
      %1700 = vmatpush1.bf16.msra.mxu0 0
      %1701 = vmatprep.subr.bf16.mxu0 0
      %1702 = vmatpush1.bf16.msra.mxu0 0
      %1703 = vmatprep.subr.bf16.mxu0 0
      %1704 = vmatpush1.bf16.msra.mxu0 0
      %1705 = vmatprep.subr.bf16.mxu0 0
      %1706 = vmatpush1.bf16.msra.mxu0 0
      %1707 = vmatprep.subr.bf16.mxu0 0
      %1708 = vmatpush1.bf16.msra.mxu0 0
      %1709 = vmatprep.subr.bf16.mxu0 0
      %1710 = vmatpush1.bf16.msra.mxu0 0
      %1711 = vmatprep.subr.bf16.mxu0 0
      %1712 = vmatpush1.bf16.msra.mxu0 0
      %1713 = vmatprep.subr.bf16.mxu0 0
      %1714 = vmatpush1.bf16.msra.mxu0 0
      %1715 = vmatprep.subr.bf16.mxu0 0
      %1716 = vmatpush1.bf16.msra.mxu0 0
      %1717 = vmatprep.mubr.bf16.mxu0 0
      %1718 = vmatmul.mubr.bf16.gmra.mrb[0].mxu0 %v1683
      %v1719 = vpop.f32.mrb[0].mxu0
      %v1720 = vadd.f32 0.0, %v1719
      %v1721 = vpop.f32.mrb[0].mxu0
      %v1722 = vpop.f32.mrb[0].mxu0
      %v1723 = vadd.f32 0.0, %v1722
      %v1724 = vpop.f32.mrb[0].mxu0
      %1725 = vdwg.mxu0
      %v1726 = vadd.f32 %v1663, %v1720
      %v1727 = vadd.f32 %v1664, %v1723
      %v1728 = vld [vmem:[%s8] sm:$0x1]
      %v1730 = vlaneseq
      %v1731 = vshrl.u32 %v1730, 7
      %v1732 = vsub.s32 0, %v1731
      %v1733 = vrot.slane %v1728, %v1732
      %v1735 = vadd.f32 %v1726, %v1733
      %v1736 = vadd.f32 %v1727, %v1733
      %1737 = vst [vmem:[%s332] sm:$0xff] %v1735
      %1738 = vst [vmem:[%s332 + $0x8] sm:$0xff] %v1736
      %p1739 = scmp.lt.s32.totalorder %s20, 1
      %s1740 = scalar_select %p1739, %s20, 1
      %s1741 = smul.addr %s1740, 2
      %s1742 = smul.addr %s1741, 8
      %s1743 = scalar_lea.vmem %s9, %s1742
      // Predicated region
      $region57: #{multiwindow_ms_g3d.1} parent=55 // pred_check
        %p1744 = pneg %p232
      $region58: #{multiwindow_ms_g3d.1} parent=55 // pred_check_branch
        %1746 = sbr.rel (%p1744) target = $region60
      $region59: #{multiwindow_ms_g3d.1} parent=55 // pred_region
        _
      $region60: #{multiwindow_ms_g3d.1} parent=55 // pred_fallthru
        _
    $region56: #{multiwindow_ms_g3d.1} parent=5 // pred_fallthru
      _
    %p1747 = scmp.le.s32.totalorder 2, %s15
    // Predicated region
    $region61: #{multiwindow_ms_g3d.1} parent=5 // pred_check
      %p1748 = pneg %p1747
    $region62: #{multiwindow_ms_g3d.1} parent=5 // pred_check_branch
      %1750 = sbr.rel (%p1748) target = $region64
    $region63: #{multiwindow_ms_g3d.1} parent=5 // pred_region
      %s1751 = ssub.s32 %s15, 2
      // Predicated region
      $region65: #{multiwindow_ms_g3d.1} parent=63 // pred_check
        %p1752 = pneg %p238
      $region66: #{multiwindow_ms_g3d.1} parent=63 // pred_check_branch
        %1754 = sbr.rel (%p1752) target = $region68
      $region67: #{multiwindow_ms_g3d.1} parent=63 // pred_region
        %p1755 = scmp.lt.s32.totalorder %s21, 1
        %s1756 = scalar_select %p1755, %s21, 1
        %s1757 = smul.addr %s1756, 2
        %s1758 = smul.addr %s1757, 8
        %s1759 = scalar_lea.vmem %s9, %s1758
      $region68: #{multiwindow_ms_g3d.1} parent=63 // pred_fallthru
        _
    $region64: #{multiwindow_ms_g3d.1} parent=5 // pred_fallthru
      _
  $region6: #{multiwindow_ms_g3d.1} parent=0 // loop_footer
    %s19 = sadd.s32 1, %s15
  $region7: #{multiwindow_ms_g3d.1} parent=0 // loop_footer_branch
    %14 = sbr.rel target = $region3
  $region8: #{multiwindow_ms_g3d.1} parent=0 // loop_exit
    _

</llo_original>
